<compile_context>
chip_gen: v7x
topology: tpu7x:2x2x1
jax: 0.10.0
libtpu: 0.0.40
codegen_flags: <defaults>
</compile_context>

<pallas_src>
import jax
import jax.numpy as jnp
from jax.experimental import pallas as pl
from jax.experimental.pallas import tpu as pltpu


def mlp_kernel(x_ref, w1_ref, b1_ref, w2_ref, b2_ref, w3_ref, b3_ref,
               y_ref, h2_ref):
    # x_ref:  (TB, d_in)  f32  (cast to bf16 in-kernel for the MXU)
    # w1_ref: (d_in, 256) bf16, b1_ref: (1, 256) f32
    # w2_ref: (256, 128)  bf16, b2_ref: (1, 128) f32
    # w3_ref: (128, DOP)  bf16, b3_ref: (1, DOP) f32
    # y_ref:  (TB, DOP)   out_dtype, h2_ref: (TB, 128) out_dtype
    x = x_ref[...].astype(jnp.bfloat16)

    h1 = jnp.dot(x, w1_ref[...], preferred_element_type=jnp.float32) + b1_ref[...]
    h1 = jnp.maximum(h1, 0.0)

    h2 = jnp.dot(h1.astype(jnp.bfloat16), w2_ref[...],
                 preferred_element_type=jnp.float32) + b2_ref[...]
    h2 = jnp.maximum(h2, 0.0)

    y = jnp.dot(h2.astype(jnp.bfloat16), w3_ref[...],
                preferred_element_type=jnp.float32) + b3_ref[...]

    y_ref[...] = y.astype(y_ref.dtype)
    h2_ref[...] = h2.astype(h2_ref.dtype)


def _round_up(n, m):
    return ((n + m - 1) // m) * m


def _pick_batch_tile(B, d_in, dop, out_bytes):
    """Largest batch tile that fits a conservative VMEM budget, balanced over tiles."""
    # Per-row bytes: double-buffered streams (f32 x in, out_dtype y/h2 out) + f32 temps.
    row = 2 * (4 * d_in + out_bytes * (dop + 128)) + 4 * (256 + 128 + dop)
    budget = 20 * 2 ** 20            # keep well under 32 MiB scoped / 64 MiB v7x physical
    tb_max = max(16, min(2048, budget // max(row, 1)))
    tb_max = max(16, (tb_max // 16) * 16)
    # Balance tiles (avoids a near-empty ragged tail, keeps >=2 tiles for big batches).
    num_tiles = -(-B // tb_max)
    tb = _round_up(-(-B // num_tiles), 16)   # multiple of 16 => sublane-safe for bf16
    return tb


def _vmem_limit_bytes(tb, d_in, dop, out_bytes, weight_bytes):
    stream = 2 * tb * (4 * d_in + out_bytes * (dop + 128))   # double-buffered x/y/h2
    scratch = tb * 4 * (256 + 128 + dop)                     # f32 intermediates
    need = 2 * weight_bytes + stream + scratch
    # Explicit limit: above v5e's 16 MiB default, below v7x's 64 MiB physical.
    return int(min(max(int(need * 1.5), 32 * 2 ** 20), 56 * 2 ** 20))


def pack_params(params):
    """One-time weight packing: transpose to (in, out), zero-pad to lane multiples, bf16.

    params: PyTorch nn.Linear layout — w1 (250, d_in), b1 (250,), w2 (100, 250),
            b2 (100,), w3 (d_out, 100), b3 (d_out,).
    """
    H1, H2 = 250, 100
    H1P, H2P = 256, 128
    d_in = params["w1"].shape[1]
    d_out = params["w3"].shape[0]
    DOP = _round_up(d_out, 128)
    f32 = jnp.float32

    w1 = (jnp.zeros((d_in, H1P), f32)
          .at[:, :H1].set(params["w1"].T.astype(f32)).astype(jnp.bfloat16))
    b1 = jnp.zeros((1, H1P), f32).at[0, :H1].set(params["b1"].astype(f32))

    w2 = (jnp.zeros((H1P, H2P), f32)
          .at[:H1, :H2].set(params["w2"].T.astype(f32)).astype(jnp.bfloat16))
    b2 = jnp.zeros((1, H2P), f32).at[0, :H2].set(params["b2"].astype(f32))

    w3 = (jnp.zeros((H2P, DOP), f32)
          .at[:H2, :d_out].set(params["w3"].T.astype(f32)).astype(jnp.bfloat16))
    b3 = jnp.zeros((1, DOP), f32).at[0, :d_out].set(params["b3"].astype(f32))

    return {"w1": w1, "b1": b1, "w2": w2, "b2": b2, "w3": w3, "b3": b3,
            "d_out": d_out}


def mlp_forward(x_nchw, packed, *, out_dtype=jnp.bfloat16):
    """Fused MLP forward. Returns (y_pred (B, d_out), h_2 (B, 100)) in out_dtype."""
    B = x_nchw.shape[0]
    x = x_nchw.reshape(B, -1)                 # x.view(B, -1); no data copy
    if x.dtype != jnp.float32:
        x = x.astype(jnp.float32)
    d_in = x.shape[1]

    w1, b1, w2, b2, w3, b3 = (packed[k] for k in ("w1", "b1", "w2", "b2", "w3", "b3"))
    d_out = packed["d_out"]
    H2, H2P = 100, 128
    DOP = w3.shape[1]
    out_bytes = jnp.dtype(out_dtype).itemsize

    TB = _pick_batch_tile(B, d_in, DOP, out_bytes)
    num_tiles = pl.cdiv(B, TB)                # ragged last tile handled by masking

    weight_bytes = sum(int(a.size) * a.dtype.itemsize
                       for a in (w1, b1, w2, b2, w3, b3))
    vmem_limit = _vmem_limit_bytes(TB, d_in, DOP, out_bytes, weight_bytes)

    # Weights/biases: same block every grid step -> VMEM-resident.
    resident = lambda a: pl.BlockSpec(a.shape, lambda i: (0, 0))

    y_p, h2_p = pl.pallas_call(
        mlp_kernel,
        out_shape=(
            jax.ShapeDtypeStruct((B, DOP), out_dtype),
            jax.ShapeDtypeStruct((B, H2P), out_dtype),
        ),
        grid=(num_tiles,),
        in_specs=[
            pl.BlockSpec((TB, d_in), lambda i: (i, 0)),   # x: streamed per batch tile
            resident(w1), resident(b1),
            resident(w2), resident(b2),
            resident(w3), resident(b3),
        ],
        out_specs=(
            pl.BlockSpec((TB, DOP), lambda i: (i, 0)),
            pl.BlockSpec((TB, H2P), lambda i: (i, 0)),
        ),
        compiler_params=pltpu.CompilerParams(
            dimension_semantics=("parallel",),   # megacore sharding on v7x
            vmem_limit_bytes=vmem_limit,
        ),
    )(x, w1, b1, w2, b2, w3, b3)

    # Strip lane padding.
    return y_p[:, :d_out], h2_p[:, :H2]


def init_params(key, input_dim, output_dim):
    """Deterministic init mimicking PyTorch nn.Linear default (U(-1/sqrt(fan_in), +))."""
    ks = jax.random.split(key, 6)

    def lin(kw, kb, fan_in, fan_out):
        bound = 1.0 / jnp.sqrt(fan_in)
        w = jax.random.uniform(kw, (fan_out, fan_in), jnp.float32, -bound, bound)
        b = jax.random.uniform(kb, (fan_out,), jnp.float32, -bound, bound)
        return w, b

    w1, b1 = lin(ks[0], ks[1], input_dim, 250)
    w2, b2 = lin(ks[2], ks[3], 250, 100)
    w3, b3 = lin(ks[4], ks[5], 100, output_dim)
    return {"w1": w1, "b1": b1, "w2": w2, "b2": b2, "w3": w3, "b3": b3}


if __name__ == "__main__":
    key = jax.random.PRNGKey(0)
    k_x, k_p = jax.random.split(key)

    # Small image-like input: batch=2, channels=4, spatial=16x16 -> input_dim=1024.
    B, C, H, W = 2, 4, 16, 16
    input_dim = C * H * W
    output_dim = 10

    x = jax.random.normal(k_x, (B, C, H, W), jnp.float32)
    params = init_params(k_p, input_dim, output_dim)
    packed = pack_params(params)              # one-time weight packing (not per call)

    y_pred, h_2 = mlp_forward(x, packed)
    jax.block_until_ready((y_pred, h_2))

    # Pure-JAX f32 reference. Kernel uses bf16 MXU inputs + f32 accumulation and bf16
    # output stores, so compare with a correspondingly loose tolerance.
    xf = x.reshape(B, -1)
    h1_ref = jnp.maximum(xf @ params["w1"].T + params["b1"], 0.0)
    h2_ref = jnp.maximum(h1_ref @ params["w2"].T + params["b2"], 0.0)
    y_ref = h2_ref @ params["w3"].T + params["b3"]

    assert y_pred.shape == (B, output_dim) and h_2.shape == (B, 100)
    assert jnp.allclose(y_pred.astype(jnp.float32), y_ref, atol=5e-2, rtol=5e-2)
    assert jnp.allclose(h_2.astype(jnp.float32), h2_ref, atol=5e-2, rtol=5e-2)

    print("KERNEL_OK")
</pallas_src>

<mosaic_0001>
module attributes {stable_mosaic.version = 11 : i64} {
  func.func @mlp_kernel(%arg0: i32, %arg1: memref<16x1024xf32, #tpu.memory_space<vmem>>, %arg2: memref<1024x256xbf16, #tpu.memory_space<vmem>>, %arg3: memref<1x256xf32, #tpu.memory_space<vmem>>, %arg4: memref<256x128xbf16, #tpu.memory_space<vmem>>, %arg5: memref<1x128xf32, #tpu.memory_space<vmem>>, %arg6: memref<128x128xbf16, #tpu.memory_space<vmem>>, %arg7: memref<1x128xf32, #tpu.memory_space<vmem>>, %arg8: memref<16x128xbf16, #tpu.memory_space<vmem>>, %arg9: memref<16x128xbf16, #tpu.memory_space<vmem>>) attributes {dimension_semantics = [#tpu.dimension_semantics<parallel>], iteration_bounds = array<i64: 1>, scalar_prefetch = 0 : i64, scratch_operands = 0 : i64, tpu.core_type = #tpu.core_type<tc>, window_params = [{transform_indices = @transform_0, window_bounds = array<i64: 16, 1024>}, {pipeline_mode = #tpu.pipeline_mode<synchronous>, transform_indices = @transform_1, window_bounds = array<i64: 1024, 256>}, {pipeline_mode = #tpu.pipeline_mode<synchronous>, transform_indices = @transform_2, window_bounds = array<i64: 1, 256>}, {pipeline_mode = #tpu.pipeline_mode<synchronous>, transform_indices = @transform_3, window_bounds = array<i64: 256, 128>}, {pipeline_mode = #tpu.pipeline_mode<synchronous>, transform_indices = @transform_4, window_bounds = array<i64: 1, 128>}, {pipeline_mode = #tpu.pipeline_mode<synchronous>, transform_indices = @transform_5, window_bounds = array<i64: 128, 128>}, {pipeline_mode = #tpu.pipeline_mode<synchronous>, transform_indices = @transform_6, window_bounds = array<i64: 1, 128>}, {transform_indices = @transform_7, window_bounds = array<i64: 16, 128>}, {transform_indices = @transform_8, window_bounds = array<i64: 16, 128>}]} {
    %c0 = arith.constant 0 : index
    %c0_0 = arith.constant 0 : index
    %0 = vector.load %arg1[%c0, %c0_0] : memref<16x1024xf32, #tpu.memory_space<vmem>>, vector<16x1024xf32>
    %1 = arith.truncf %0 : vector<16x1024xf32> to vector<16x1024xbf16>
    %c0_1 = arith.constant 0 : index
    %c0_2 = arith.constant 0 : index
    %2 = vector.load %arg2[%c0_1, %c0_2] : memref<1024x256xbf16, #tpu.memory_space<vmem>>, vector<1024x256xbf16>
    %cst = arith.constant dense<0.000000e+00> : vector<16x256xf32>
    %3 = tpu.matmul %1, %2, %cst {dimension_numbers = #tpu.dot_dimension_numbers<[1], [0], [0], [1], [0, 0, 1, 1], [], []>} : vector<16x1024xbf16>, vector<1024x256xbf16>, vector<16x256xf32> -> vector<16x256xf32>
    %c0_3 = arith.constant 0 : index
    %c0_4 = arith.constant 0 : index
    %4 = vector.load %arg3[%c0_3, %c0_4] : memref<1x256xf32, #tpu.memory_space<vmem>>, vector<1x256xf32>
    %5 = vector.broadcast %4 : vector<1x256xf32> to vector<16x256xf32>
    %6 = arith.addf %3, %5 : vector<16x256xf32>
    %cst_5 = arith.constant 0.000000e+00 : f32
    %7 = vector.broadcast %cst_5 : f32 to vector<16x256xf32>
    %8 = arith.maximumf %6, %7 : vector<16x256xf32>
    %9 = arith.truncf %8 : vector<16x256xf32> to vector<16x256xbf16>
    %c0_6 = arith.constant 0 : index
    %c0_7 = arith.constant 0 : index
    %10 = vector.load %arg4[%c0_6, %c0_7] : memref<256x128xbf16, #tpu.memory_space<vmem>>, vector<256x128xbf16>
    %cst_8 = arith.constant dense<0.000000e+00> : vector<16x128xf32>
    %11 = tpu.matmul %9, %10, %cst_8 {dimension_numbers = #tpu.dot_dimension_numbers<[1], [0], [0], [1], [0, 0, 1, 1], [], []>} : vector<16x256xbf16>, vector<256x128xbf16>, vector<16x128xf32> -> vector<16x128xf32>
    %c0_9 = arith.constant 0 : index
    %c0_10 = arith.constant 0 : index
    %12 = vector.load %arg5[%c0_9, %c0_10] : memref<1x128xf32, #tpu.memory_space<vmem>>, vector<1x128xf32>
    %13 = vector.broadcast %12 : vector<1x128xf32> to vector<16x128xf32>
    %14 = arith.addf %11, %13 : vector<16x128xf32>
    %cst_11 = arith.constant 0.000000e+00 : f32
    %15 = vector.broadcast %cst_11 : f32 to vector<16x128xf32>
    %16 = arith.maximumf %14, %15 : vector<16x128xf32>
    %17 = arith.truncf %16 : vector<16x128xf32> to vector<16x128xbf16>
    %c0_12 = arith.constant 0 : index
    %c0_13 = arith.constant 0 : index
    %18 = vector.load %arg6[%c0_12, %c0_13] : memref<128x128xbf16, #tpu.memory_space<vmem>>, vector<128x128xbf16>
    %cst_14 = arith.constant dense<0.000000e+00> : vector<16x128xf32>
    %19 = tpu.matmul %17, %18, %cst_14 {dimension_numbers = #tpu.dot_dimension_numbers<[1], [0], [0], [1], [0, 0, 1, 1], [], []>} : vector<16x128xbf16>, vector<128x128xbf16>, vector<16x128xf32> -> vector<16x128xf32>
    %c0_15 = arith.constant 0 : index
    %c0_16 = arith.constant 0 : index
    %20 = vector.load %arg7[%c0_15, %c0_16] : memref<1x128xf32, #tpu.memory_space<vmem>>, vector<1x128xf32>
    %21 = vector.broadcast %20 : vector<1x128xf32> to vector<16x128xf32>
    %22 = arith.addf %19, %21 : vector<16x128xf32>
    %23 = arith.truncf %22 : vector<16x128xf32> to vector<16x128xbf16>
    %c0_17 = arith.constant 0 : index
    %c0_18 = arith.constant 0 : index
    %24 = vector.load %arg8[%c0_17, %c0_18] : memref<16x128xbf16, #tpu.memory_space<vmem>>, vector<16x128xbf16>
    tpu.vector_store %arg8[%c0_17, %c0_18], %23 {strides = array<i32>} : memref<16x128xbf16, #tpu.memory_space<vmem>>, vector<16x128xbf16>,
    %25 = arith.truncf %16 : vector<16x128xf32> to vector<16x128xbf16>
    %c0_19 = arith.constant 0 : index
    %c0_20 = arith.constant 0 : index
    %26 = vector.load %arg9[%c0_19, %c0_20] : memref<16x128xbf16, #tpu.memory_space<vmem>>, vector<16x128xbf16>
    tpu.vector_store %arg9[%c0_19, %c0_20], %25 {strides = array<i32>} : memref<16x128xbf16, #tpu.memory_space<vmem>>, vector<16x128xbf16>,
    return
  }
  func.func @transform_0(%arg0: i32) -> (i32, i32) {
    %c0_i32 = arith.constant 0 : i32
    %c0_i32_0 = arith.constant 0 : i32
    return %arg0, %c0_i32 : i32, i32
  }
  func.func @transform_1(%arg0: i32) -> (i32, i32) {
    %c0_i32 = arith.constant 0 : i32
    %c0_i32_0 = arith.constant 0 : i32
    %c0_i32_1 = arith.constant 0 : i32
    return %c0_i32, %c0_i32_0 : i32, i32
  }
  func.func @transform_2(%arg0: i32) -> (i32, i32) {
    %c0_i32 = arith.constant 0 : i32
    %c0_i32_0 = arith.constant 0 : i32
    %c0_i32_1 = arith.constant 0 : i32
    return %c0_i32, %c0_i32_0 : i32, i32
  }
  func.func @transform_3(%arg0: i32) -> (i32, i32) {
    %c0_i32 = arith.constant 0 : i32
    %c0_i32_0 = arith.constant 0 : i32
    %c0_i32_1 = arith.constant 0 : i32
    return %c0_i32, %c0_i32_0 : i32, i32
  }
  func.func @transform_4(%arg0: i32) -> (i32, i32) {
    %c0_i32 = arith.constant 0 : i32
    %c0_i32_0 = arith.constant 0 : i32
    %c0_i32_1 = arith.constant 0 : i32
    return %c0_i32, %c0_i32_0 : i32, i32
  }
  func.func @transform_5(%arg0: i32) -> (i32, i32) {
    %c0_i32 = arith.constant 0 : i32
    %c0_i32_0 = arith.constant 0 : i32
    %c0_i32_1 = arith.constant 0 : i32
    return %c0_i32, %c0_i32_0 : i32, i32
  }
  func.func @transform_6(%arg0: i32) -> (i32, i32) {
    %c0_i32 = arith.constant 0 : i32
    %c0_i32_0 = arith.constant 0 : i32
    %c0_i32_1 = arith.constant 0 : i32
    return %c0_i32, %c0_i32_0 : i32, i32
  }
  func.func @transform_7(%arg0: i32) -> (i32, i32) {
    %c0_i32 = arith.constant 0 : i32
    %c0_i32_0 = arith.constant 0 : i32
    return %arg0, %c0_i32 : i32, i32
  }
  func.func @transform_8(%arg0: i32) -> (i32, i32) {
    %c0_i32 = arith.constant 0 : i32
    %c0_i32_0 = arith.constant 0 : i32
    return %arg0, %c0_i32 : i32, i32
  }
}

</mosaic_0001>

<llo_original>
// kernel: tpu_custom_call.1
$region0: #{tpu_custom_call.1}
  #allocation0 [shape = 'u32[]', space=smem, size = 0x4, offset = 0x4, fixed_abs, tag = 'smem constant byte address 0x4 - core index']
  #allocation1 [shape = 'u32[144,128]{1,0:T(1,128)}', space=vmem, size = 0x12000, scoped, tag = 'internal scratch']
  %s0 = inlined_call_operand.hbm [shape: f32[2,1024], index: 0, kind: input, shape index: {}]
  %s1 = inlined_call_operand.hbm [shape: bf16[1024,256], index: 1, kind: input, shape index: {}]
  %s2 = inlined_call_operand.vmem [shape: f32[1,256], index: 2, kind: input, shape index: {}]
  %s3 = inlined_call_operand.hbm [shape: bf16[256,128], index: 3, kind: input, shape index: {}]
  %s4 = inlined_call_operand.vmem [shape: f32[1,128], index: 4, kind: input, shape index: {}]
  %s5 = inlined_call_operand.hbm [shape: bf16[128,128], index: 5, kind: input, shape index: {}]
  %s6 = inlined_call_operand.vmem [shape: f32[1,128], index: 6, kind: input, shape index: {}]
  %s7 = inlined_call_operand.hbm [shape: bf16[2,128], index: 7, kind: output, shape index: {0}]
  %s8 = inlined_call_operand.hbm [shape: bf16[2,128], index: 8, kind: output, shape index: {1}]
  %9 = xla_tuple %s7, %s8
  %s10 = sld [smem:[#allocation0]]
  $region62: #{tpu_custom_call.1} parent=0
    _
  %s12 = ssub.s32 1, %s10
  %s13 = scalar_select 0, %s12, %s10
  $region1: #{tpu_custom_call.1} parent=0
    #allocation2 [shape = 'u8[65536]{0}', space=vmem, size = 0x10000, scoped, tag = 'input window, operand 0, single buffered']
    #allocation3 [shape = 's32[1]{0}', space=sflag, size = 0x4, scoped, tag = 'scoped memory for tpu_custom_call.1']
    #allocation4 [shape = 's32[1]{0}', space=sflag, size = 0x4, scoped, tag = 'scoped memory for tpu_custom_call.1']
    #allocation5 [shape = 'u8[524288]{0}', space=vmem, size = 0x80000, scoped, tag = 'input window, operand 1, single buffered']
    #allocation6 [shape = 's32[1]{0}', space=sflag, size = 0x4, scoped, tag = 'scoped memory for tpu_custom_call.1']
    #allocation7 [shape = 'u8[65536]{0}', space=vmem, size = 0x10000, scoped, tag = 'input window, operand 3, single buffered']
    #allocation8 [shape = 'u8[32768]{0}', space=vmem, size = 0x8000, scoped, tag = 'input window, operand 5, single buffered']
    #allocation9 [shape = 's32[1]{0}', space=sflag, size = 0x4, scoped, tag = 'scoped memory for tpu_custom_call.1']
    #allocation10 [shape = 'u8[4096]{0}', space=vmem, size = 0x1000, scoped, tag = 'output window, operand 0, single buffered']
    #allocation11 [shape = 'u8[4096]{0}', space=vmem, size = 0x1000, scoped, tag = 'output window, operand 1, single buffered']
    #allocation12 [shape = 's32[1]{0}', space=sflag, size = 0x4, scoped, tag = 'scoped memory for tpu_custom_call.1']
    %14 = vsyncpa [#allocation3], 0
    %15 = vsyncpa [#allocation6], 0
    %16 = vsyncpa [#allocation9], 0
    %17 = vsyncpa [#allocation4], 0
    %18 = vsyncpa [#allocation12], 0
    // Predicated region
    $region2: #{tpu_custom_call.1} parent=1 // pred_check
      _
    $region3: #{tpu_custom_call.1} parent=1 // pred_check_branch
      %20 = sbr.rel (0) target = $region5
    $region4: #{tpu_custom_call.1} parent=1 // pred_region
      %s22 = ssub.s32 2048, 256
      %23 = vsyncadd [#allocation3], %s22
      %s24 = sshll.u32 [#allocation2], 4
      %s25 = int_to_ptr.vmem [resolvable:$true] %s24
      %30 = dma.hbm_to_vmem [thread:$0]  %s0, 256, %s25, [#allocation3], 256, 256, 16
    $region5: #{tpu_custom_call.1} parent=1 // pred_fallthru
      _
    // Predicated region
    $region6: #{tpu_custom_call.1} parent=1 // pred_check
      _
    $region7: #{tpu_custom_call.1} parent=1 // pred_check_branch
      %32 = sbr.rel (0) target = $region9
    $region8: #{tpu_custom_call.1} parent=1 // pred_region
      %s34 = ssub.s32 16384, 16384
      %35 = vsyncadd [#allocation6], %s34
      %s36 = sshll.u32 [#allocation5], 4
      %s37 = int_to_ptr.vmem [resolvable:$true] %s36
      %42 = dma.hbm_to_vmem [thread:$0]  %s1, 16384, %s37, [#allocation6], 128, 128, 8
    $region9: #{tpu_custom_call.1} parent=1 // pred_fallthru
      _
    // Predicated region
    $region10: #{tpu_custom_call.1} parent=1 // pred_check
      _
    $region11: #{tpu_custom_call.1} parent=1 // pred_check_branch
      %44 = sbr.rel (0) target = $region13
    $region12: #{tpu_custom_call.1} parent=1 // pred_region
      _
    $region13: #{tpu_custom_call.1} parent=1 // pred_fallthru
      _
    // Predicated region
    $region14: #{tpu_custom_call.1} parent=1 // pred_check
      _
    $region15: #{tpu_custom_call.1} parent=1 // pred_check_branch
      %46 = sbr.rel (0) target = $region17
    $region16: #{tpu_custom_call.1} parent=1 // pred_region
      %s48 = ssub.s32 2048, 2048
      %49 = vsyncadd [#allocation6], %s48
      %s50 = sshll.u32 [#allocation7], 4
      %s51 = int_to_ptr.vmem [resolvable:$true] %s50
      %56 = dma.hbm_to_vmem [thread:$0]  %s3, 2048, %s51, [#allocation6], 64, 64, 4
    $region17: #{tpu_custom_call.1} parent=1 // pred_fallthru
      _
    // Predicated region
    $region18: #{tpu_custom_call.1} parent=1 // pred_check
      _
    $region19: #{tpu_custom_call.1} parent=1 // pred_check_branch
      %58 = sbr.rel (0) target = $region21
    $region20: #{tpu_custom_call.1} parent=1 // pred_region
      _
    $region21: #{tpu_custom_call.1} parent=1 // pred_fallthru
      _
    // Predicated region
    $region22: #{tpu_custom_call.1} parent=1 // pred_check
      _
    $region23: #{tpu_custom_call.1} parent=1 // pred_check_branch
      %60 = sbr.rel (0) target = $region25
    $region24: #{tpu_custom_call.1} parent=1 // pred_region
      %s62 = ssub.s32 1024, 1024
      %63 = vsyncadd [#allocation9], %s62
      %s64 = sshll.u32 [#allocation8], 4
      %s65 = int_to_ptr.vmem [resolvable:$true] %s64
      %70 = dma.hbm_to_vmem [thread:$0]  %s5, 1024, %s65, [#allocation9], 64, 64, 4
    $region25: #{tpu_custom_call.1} parent=1 // pred_fallthru
      _
    // Predicated region
    $region26: #{tpu_custom_call.1} parent=1 // pred_check
      _
    $region27: #{tpu_custom_call.1} parent=1 // pred_check_branch
      %72 = sbr.rel (0) target = $region29
    $region28: #{tpu_custom_call.1} parent=1 // pred_region
      _
    $region29: #{tpu_custom_call.1} parent=1 // pred_fallthru
      _
    // Predicated region
    $region30: #{tpu_custom_call.1} parent=1 // pred_check
      _
    $region31: #{tpu_custom_call.1} parent=1 // pred_check_branch
      %74 = sbr.rel (0) target = $region33
    $region32: #{tpu_custom_call.1} parent=1 // pred_region
      %75 = dma.done [#allocation3], 2048
    $region33: #{tpu_custom_call.1} parent=1 // pred_fallthru
      _
    // Predicated region
    $region34: #{tpu_custom_call.1} parent=1 // pred_check
      _
    $region35: #{tpu_custom_call.1} parent=1 // pred_check_branch
      %77 = sbr.rel (0) target = $region37
    $region36: #{tpu_custom_call.1} parent=1 // pred_region
      %78 = dma.done [#allocation6], 16384
    $region37: #{tpu_custom_call.1} parent=1 // pred_fallthru
      _
    // Predicated region
    $region38: #{tpu_custom_call.1} parent=1 // pred_check
      _
    $region39: #{tpu_custom_call.1} parent=1 // pred_check_branch
      %80 = sbr.rel (0) target = $region41
    $region40: #{tpu_custom_call.1} parent=1 // pred_region
      %81 = dma.done [#allocation6], 2048
    $region41: #{tpu_custom_call.1} parent=1 // pred_fallthru
      _
    // Predicated region
    $region42: #{tpu_custom_call.1} parent=1 // pred_check
      _
    $region43: #{tpu_custom_call.1} parent=1 // pred_check_branch
      %83 = sbr.rel (0) target = $region45
    $region44: #{tpu_custom_call.1} parent=1 // pred_region
      %84 = dma.done [#allocation9], 1024
    $region45: #{tpu_custom_call.1} parent=1 // pred_fallthru
      _
    %v86 = vld [vmem:[#allocation2] sm:$0xff]
    %v87 = vld [vmem:[#allocation2 + $0x8] sm:$0xff]
    %v88 = vld [vmem:[#allocation2 + $0x10] sm:$0xff]
    %v89 = vld [vmem:[#allocation2 + $0x18] sm:$0xff]
    %v90 = vld [vmem:[#allocation2 + $0x20] sm:$0xff]
    %v91 = vld [vmem:[#allocation2 + $0x28] sm:$0xff]
    %v92 = vld [vmem:[#allocation2 + $0x30] sm:$0xff]
    %v93 = vld [vmem:[#allocation2 + $0x38] sm:$0xff]
    %v94 = vld [vmem:[#allocation2 + $0x40] sm:$0xff]
    %v95 = vld [vmem:[#allocation2 + $0x48] sm:$0xff]
    %v96 = vld [vmem:[#allocation2 + $0x50] sm:$0xff]
    %v97 = vld [vmem:[#allocation2 + $0x58] sm:$0xff]
    %v98 = vld [vmem:[#allocation2 + $0x60] sm:$0xff]
    %v99 = vld [vmem:[#allocation2 + $0x68] sm:$0xff]
    %v100 = vld [vmem:[#allocation2 + $0x70] sm:$0xff]
    %v101 = vld [vmem:[#allocation2 + $0x78] sm:$0xff]
    %v118 = vcombine.low %v86, %v88
    %v119 = vcombine.high %v86, %v88
    %v120 = vcombine.low %v90, %v92
    %v121 = vcombine.high %v90, %v92
    %v123 = vunpack.c.l.s4 1983009808
    %v124 = vunpack.c.0.s8 %v123
    %v125 = vlaneseq
    %v126 = vshrl.u32 %v125, 7
    %v127 = vsub.s32 %v124, %v126
    %v128 = vrot.slane %v118, %v127
    %v130 = vunpack.c.l.s4 1983009808
    %v131 = vunpack.c.0.s8 %v130
    %v132 = vlaneseq
    %v133 = vshrl.u32 %v132, 7
    %v134 = vsub.s32 %v131, %v133
    %v135 = vrot.slane %v119, %v134
    %v137 = vunpack.c.l.s4 1983009808
    %v138 = vunpack.c.0.s8 %v137
    %v139 = vlaneseq
    %v140 = vshrl.u32 %v139, 7
    %v141 = vsub.s32 %v138, %v140
    %v142 = vrot.slane %v120, %v141
    %v144 = vunpack.c.l.s4 1983009808
    %v145 = vunpack.c.0.s8 %v144
    %v146 = vlaneseq
    %v147 = vshrl.u32 %v146, 7
    %v148 = vsub.s32 %v145, %v147
    %v149 = vrot.slane %v121, %v148
    %v150 = vcombine.low %v128, %v142
    %v151 = vcombine.high %v128, %v142
    %v152 = vcombine.low %v135, %v149
    %v153 = vcombine.high %v135, %v149
    %v154 = vcombine.low %v87, %v89
    %v155 = vcombine.high %v87, %v89
    %v156 = vcombine.low %v91, %v93
    %v157 = vcombine.high %v91, %v93
    %v159 = vunpack.c.l.s4 1983009808
    %v160 = vunpack.c.0.s8 %v159
    %v161 = vlaneseq
    %v162 = vshrl.u32 %v161, 7
    %v163 = vsub.s32 %v160, %v162
    %v164 = vrot.slane %v154, %v163
    %v166 = vunpack.c.l.s4 1983009808
    %v167 = vunpack.c.0.s8 %v166
    %v168 = vlaneseq
    %v169 = vshrl.u32 %v168, 7
    %v170 = vsub.s32 %v167, %v169
    %v171 = vrot.slane %v155, %v170
    %v173 = vunpack.c.l.s4 1983009808
    %v174 = vunpack.c.0.s8 %v173
    %v175 = vlaneseq
    %v176 = vshrl.u32 %v175, 7
    %v177 = vsub.s32 %v174, %v176
    %v178 = vrot.slane %v156, %v177
    %v180 = vunpack.c.l.s4 1983009808
    %v181 = vunpack.c.0.s8 %v180
    %v182 = vlaneseq
    %v183 = vshrl.u32 %v182, 7
    %v184 = vsub.s32 %v181, %v183
    %v185 = vrot.slane %v157, %v184
    %v186 = vcombine.low %v164, %v178
    %v187 = vcombine.high %v164, %v178
    %v188 = vcombine.low %v171, %v185
    %v189 = vcombine.high %v171, %v185
    %v190 = vcombine.low %v94, %v96
    %v191 = vcombine.high %v94, %v96
    %v192 = vcombine.low %v98, %v100
    %v193 = vcombine.high %v98, %v100
    %v195 = vunpack.c.l.s4 1983009808
    %v196 = vunpack.c.0.s8 %v195
    %v197 = vlaneseq
    %v198 = vshrl.u32 %v197, 7
    %v199 = vsub.s32 %v196, %v198
    %v200 = vrot.slane %v190, %v199
    %v202 = vunpack.c.l.s4 1983009808
    %v203 = vunpack.c.0.s8 %v202
    %v204 = vlaneseq
    %v205 = vshrl.u32 %v204, 7
    %v206 = vsub.s32 %v203, %v205
    %v207 = vrot.slane %v191, %v206
    %v209 = vunpack.c.l.s4 1983009808
    %v210 = vunpack.c.0.s8 %v209
    %v211 = vlaneseq
    %v212 = vshrl.u32 %v211, 7
    %v213 = vsub.s32 %v210, %v212
    %v214 = vrot.slane %v192, %v213
    %v216 = vunpack.c.l.s4 1983009808
    %v217 = vunpack.c.0.s8 %v216
    %v218 = vlaneseq
    %v219 = vshrl.u32 %v218, 7
    %v220 = vsub.s32 %v217, %v219
    %v221 = vrot.slane %v193, %v220
    %v222 = vcombine.low %v200, %v214
    %v223 = vcombine.high %v200, %v214
    %v224 = vcombine.low %v207, %v221
    %v225 = vcombine.high %v207, %v221
    %v226 = vcombine.low %v95, %v97
    %v227 = vcombine.high %v95, %v97
    %v228 = vcombine.low %v99, %v101
    %v229 = vcombine.high %v99, %v101
    %v231 = vunpack.c.l.s4 1983009808
    %v232 = vunpack.c.0.s8 %v231
    %v233 = vlaneseq
    %v234 = vshrl.u32 %v233, 7
    %v235 = vsub.s32 %v232, %v234
    %v236 = vrot.slane %v226, %v235
    %v238 = vunpack.c.l.s4 1983009808
    %v239 = vunpack.c.0.s8 %v238
    %v240 = vlaneseq
    %v241 = vshrl.u32 %v240, 7
    %v242 = vsub.s32 %v239, %v241
    %v243 = vrot.slane %v227, %v242
    %v245 = vunpack.c.l.s4 1983009808
    %v246 = vunpack.c.0.s8 %v245
    %v247 = vlaneseq
    %v248 = vshrl.u32 %v247, 7
    %v249 = vsub.s32 %v246, %v248
    %v250 = vrot.slane %v228, %v249
    %v252 = vunpack.c.l.s4 1983009808
    %v253 = vunpack.c.0.s8 %v252
    %v254 = vlaneseq
    %v255 = vshrl.u32 %v254, 7
    %v256 = vsub.s32 %v253, %v255
    %v257 = vrot.slane %v229, %v256
    %v258 = vcombine.low %v236, %v250
    %v259 = vcombine.high %v236, %v250
    %v260 = vcombine.low %v243, %v257
    %v261 = vcombine.high %v243, %v257
    %v278 = vpack.c.bf16 %v222, %v150
    %v279 = vpack.c.bf16 %v223, %v151
    %v280 = vpack.c.bf16 %v224, %v152
    %v281 = vpack.c.bf16 %v225, %v153
    %v282 = vpack.c.bf16 %v258, %v186
    %v283 = vpack.c.bf16 %v259, %v187
    %v284 = vpack.c.bf16 %v260, %v188
    %v285 = vpack.c.bf16 %v261, %v189
    %v286 = vld [vmem:[#allocation5] sm:$0xff]
    %v287 = vld [vmem:[#allocation5 + $0x8] sm:$0xff]
    %v288 = vld [vmem:[#allocation5 + $0x10] sm:$0xff]
    %v289 = vld [vmem:[#allocation5 + $0x18] sm:$0xff]
    %v290 = vld [vmem:[#allocation5 + $0x20] sm:$0xff]
    %v291 = vld [vmem:[#allocation5 + $0x28] sm:$0xff]
    %v292 = vld [vmem:[#allocation5 + $0x30] sm:$0xff]
    %v293 = vld [vmem:[#allocation5 + $0x38] sm:$0xff]
    %v294 = vld [vmem:[#allocation5 + $0x40] sm:$0xff]
    %v295 = vld [vmem:[#allocation5 + $0x48] sm:$0xff]
    %v296 = vld [vmem:[#allocation5 + $0x50] sm:$0xff]
    %v297 = vld [vmem:[#allocation5 + $0x58] sm:$0xff]
    %v298 = vld [vmem:[#allocation5 + $0x60] sm:$0xff]
    %v299 = vld [vmem:[#allocation5 + $0x68] sm:$0xff]
    %v300 = vld [vmem:[#allocation5 + $0x70] sm:$0xff]
    %v301 = vld [vmem:[#allocation5 + $0x78] sm:$0xff]
    %v302 = vld [vmem:[#allocation5 + $0x80] sm:$0xff]
    %v303 = vld [vmem:[#allocation5 + $0x88] sm:$0xff]
    %v304 = vld [vmem:[#allocation5 + $0x90] sm:$0xff]
    %v305 = vld [vmem:[#allocation5 + $0x98] sm:$0xff]
    %v306 = vld [vmem:[#allocation5 + $0xa0] sm:$0xff]
    %v307 = vld [vmem:[#allocation5 + $0xa8] sm:$0xff]
    %v308 = vld [vmem:[#allocation5 + $0xb0] sm:$0xff]
    %v309 = vld [vmem:[#allocation5 + $0xb8] sm:$0xff]
    %v310 = vld [vmem:[#allocation5 + $0xc0] sm:$0xff]
    %v311 = vld [vmem:[#allocation5 + $0xc8] sm:$0xff]
    %v312 = vld [vmem:[#allocation5 + $0xd0] sm:$0xff]
    %v313 = vld [vmem:[#allocation5 + $0xd8] sm:$0xff]
    %v314 = vld [vmem:[#allocation5 + $0xe0] sm:$0xff]
    %v315 = vld [vmem:[#allocation5 + $0xe8] sm:$0xff]
    %v316 = vld [vmem:[#allocation5 + $0xf0] sm:$0xff]
    %v317 = vld [vmem:[#allocation5 + $0xf8] sm:$0xff]
    %v318 = vld [vmem:[#allocation5 + $0x100] sm:$0xff]
    %v319 = vld [vmem:[#allocation5 + $0x108] sm:$0xff]
    %v320 = vld [vmem:[#allocation5 + $0x110] sm:$0xff]
    %v321 = vld [vmem:[#allocation5 + $0x118] sm:$0xff]
    %v322 = vld [vmem:[#allocation5 + $0x120] sm:$0xff]
    %v323 = vld [vmem:[#allocation5 + $0x128] sm:$0xff]
    %v324 = vld [vmem:[#allocation5 + $0x130] sm:$0xff]
    %v325 = vld [vmem:[#allocation5 + $0x138] sm:$0xff]
    %v326 = vld [vmem:[#allocation5 + $0x140] sm:$0xff]
    %v327 = vld [vmem:[#allocation5 + $0x148] sm:$0xff]
    %v328 = vld [vmem:[#allocation5 + $0x150] sm:$0xff]
    %v329 = vld [vmem:[#allocation5 + $0x158] sm:$0xff]
    %v330 = vld [vmem:[#allocation5 + $0x160] sm:$0xff]
    %v331 = vld [vmem:[#allocation5 + $0x168] sm:$0xff]
    %v332 = vld [vmem:[#allocation5 + $0x170] sm:$0xff]
    %v333 = vld [vmem:[#allocation5 + $0x178] sm:$0xff]
    %v334 = vld [vmem:[#allocation5 + $0x180] sm:$0xff]
    %v335 = vld [vmem:[#allocation5 + $0x188] sm:$0xff]
    %v336 = vld [vmem:[#allocation5 + $0x190] sm:$0xff]
    %v337 = vld [vmem:[#allocation5 + $0x198] sm:$0xff]
    %v338 = vld [vmem:[#allocation5 + $0x1a0] sm:$0xff]
    %v339 = vld [vmem:[#allocation5 + $0x1a8] sm:$0xff]
    %v340 = vld [vmem:[#allocation5 + $0x1b0] sm:$0xff]
    %v341 = vld [vmem:[#allocation5 + $0x1b8] sm:$0xff]
    %v342 = vld [vmem:[#allocation5 + $0x1c0] sm:$0xff]
    %v343 = vld [vmem:[#allocation5 + $0x1c8] sm:$0xff]
    %v344 = vld [vmem:[#allocation5 + $0x1d0] sm:$0xff]
    %v345 = vld [vmem:[#allocation5 + $0x1d8] sm:$0xff]
    %v346 = vld [vmem:[#allocation5 + $0x1e0] sm:$0xff]
    %v347 = vld [vmem:[#allocation5 + $0x1e8] sm:$0xff]
    %v348 = vld [vmem:[#allocation5 + $0x1f0] sm:$0xff]
    %v349 = vld [vmem:[#allocation5 + $0x1f8] sm:$0xff]
    %v350 = vld [vmem:[#allocation5 + $0x200] sm:$0xff]
    %v351 = vld [vmem:[#allocation5 + $0x208] sm:$0xff]
    %v352 = vld [vmem:[#allocation5 + $0x210] sm:$0xff]
    %v353 = vld [vmem:[#allocation5 + $0x218] sm:$0xff]
    %v354 = vld [vmem:[#allocation5 + $0x220] sm:$0xff]
    %v355 = vld [vmem:[#allocation5 + $0x228] sm:$0xff]
    %v356 = vld [vmem:[#allocation5 + $0x230] sm:$0xff]
    %v357 = vld [vmem:[#allocation5 + $0x238] sm:$0xff]
    %v358 = vld [vmem:[#allocation5 + $0x240] sm:$0xff]
    %v359 = vld [vmem:[#allocation5 + $0x248] sm:$0xff]
    %v360 = vld [vmem:[#allocation5 + $0x250] sm:$0xff]
    %v361 = vld [vmem:[#allocation5 + $0x258] sm:$0xff]
    %v362 = vld [vmem:[#allocation5 + $0x260] sm:$0xff]
    %v363 = vld [vmem:[#allocation5 + $0x268] sm:$0xff]
    %v364 = vld [vmem:[#allocation5 + $0x270] sm:$0xff]
    %v365 = vld [vmem:[#allocation5 + $0x278] sm:$0xff]
    %v366 = vld [vmem:[#allocation5 + $0x280] sm:$0xff]
    %v367 = vld [vmem:[#allocation5 + $0x288] sm:$0xff]
    %v368 = vld [vmem:[#allocation5 + $0x290] sm:$0xff]
    %v369 = vld [vmem:[#allocation5 + $0x298] sm:$0xff]
    %v370 = vld [vmem:[#allocation5 + $0x2a0] sm:$0xff]
    %v371 = vld [vmem:[#allocation5 + $0x2a8] sm:$0xff]
    %v372 = vld [vmem:[#allocation5 + $0x2b0] sm:$0xff]
    %v373 = vld [vmem:[#allocation5 + $0x2b8] sm:$0xff]
    %v374 = vld [vmem:[#allocation5 + $0x2c0] sm:$0xff]
    %v375 = vld [vmem:[#allocation5 + $0x2c8] sm:$0xff]
    %v376 = vld [vmem:[#allocation5 + $0x2d0] sm:$0xff]
    %v377 = vld [vmem:[#allocation5 + $0x2d8] sm:$0xff]
    %v378 = vld [vmem:[#allocation5 + $0x2e0] sm:$0xff]
    %v379 = vld [vmem:[#allocation5 + $0x2e8] sm:$0xff]
    %v380 = vld [vmem:[#allocation5 + $0x2f0] sm:$0xff]
    %v381 = vld [vmem:[#allocation5 + $0x2f8] sm:$0xff]
    %v382 = vld [vmem:[#allocation5 + $0x300] sm:$0xff]
    %v383 = vld [vmem:[#allocation5 + $0x308] sm:$0xff]
    %v384 = vld [vmem:[#allocation5 + $0x310] sm:$0xff]
    %v385 = vld [vmem:[#allocation5 + $0x318] sm:$0xff]
    %v386 = vld [vmem:[#allocation5 + $0x320] sm:$0xff]
    %v387 = vld [vmem:[#allocation5 + $0x328] sm:$0xff]
    %v388 = vld [vmem:[#allocation5 + $0x330] sm:$0xff]
    %v389 = vld [vmem:[#allocation5 + $0x338] sm:$0xff]
    %v390 = vld [vmem:[#allocation5 + $0x340] sm:$0xff]
    %v391 = vld [vmem:[#allocation5 + $0x348] sm:$0xff]
    %v392 = vld [vmem:[#allocation5 + $0x350] sm:$0xff]
    %v393 = vld [vmem:[#allocation5 + $0x358] sm:$0xff]
    %v394 = vld [vmem:[#allocation5 + $0x360] sm:$0xff]
    %v395 = vld [vmem:[#allocation5 + $0x368] sm:$0xff]
    %v396 = vld [vmem:[#allocation5 + $0x370] sm:$0xff]
    %v397 = vld [vmem:[#allocation5 + $0x378] sm:$0xff]
    %v398 = vld [vmem:[#allocation5 + $0x380] sm:$0xff]
    %v399 = vld [vmem:[#allocation5 + $0x388] sm:$0xff]
    %v400 = vld [vmem:[#allocation5 + $0x390] sm:$0xff]
    %v401 = vld [vmem:[#allocation5 + $0x398] sm:$0xff]
    %v402 = vld [vmem:[#allocation5 + $0x3a0] sm:$0xff]
    %v403 = vld [vmem:[#allocation5 + $0x3a8] sm:$0xff]
    %v404 = vld [vmem:[#allocation5 + $0x3b0] sm:$0xff]
    %v405 = vld [vmem:[#allocation5 + $0x3b8] sm:$0xff]
    %v406 = vld [vmem:[#allocation5 + $0x3c0] sm:$0xff]
    %v407 = vld [vmem:[#allocation5 + $0x3c8] sm:$0xff]
    %v408 = vld [vmem:[#allocation5 + $0x3d0] sm:$0xff]
    %v409 = vld [vmem:[#allocation5 + $0x3d8] sm:$0xff]
    %v410 = vld [vmem:[#allocation5 + $0x3e0] sm:$0xff]
    %v411 = vld [vmem:[#allocation5 + $0x3e8] sm:$0xff]
    %v412 = vld [vmem:[#allocation5 + $0x3f0] sm:$0xff]
    %v413 = vld [vmem:[#allocation5 + $0x3f8] sm:$0xff]
    %v414 = vld [vmem:[%s2] sm:$0x3]
    %v416 = vlaneseq
    %v417 = vshrl.u32 %v416, 7
    %v418 = vsub.s32 0, %v417
    %v419 = vrot.slane %v414, %v418
    %v420 = vlaneseq
    %v421 = vshrl.u32 %v420, 7
    %v422 = vsub.s32 1, %v421
    %v423 = vrot.slane %v414, %v422
    %v554 = vunpack.c.l.b16 %v286
    %v555 = vunpack.c.h.b16 %v286
    %v556 = vunpack.c.l.b16 %v287
    %v557 = vunpack.c.h.b16 %v287
    %v558 = vunpack.c.l.b16 %v288
    %v559 = vunpack.c.h.b16 %v288
    %v560 = vunpack.c.l.b16 %v289
    %v561 = vunpack.c.h.b16 %v289
    %v562 = vunpack.c.l.b16 %v290
    %v563 = vunpack.c.h.b16 %v290
    %v564 = vunpack.c.l.b16 %v291
    %v565 = vunpack.c.h.b16 %v291
    %v566 = vunpack.c.l.b16 %v292
    %v567 = vunpack.c.h.b16 %v292
    %v568 = vunpack.c.l.b16 %v293
    %v569 = vunpack.c.h.b16 %v293
    %v570 = vunpack.c.l.b16 %v294
    %v571 = vunpack.c.h.b16 %v294
    %v572 = vunpack.c.l.b16 %v295
    %v573 = vunpack.c.h.b16 %v295
    %v574 = vunpack.c.l.b16 %v296
    %v575 = vunpack.c.h.b16 %v296
    %v576 = vunpack.c.l.b16 %v297
    %v577 = vunpack.c.h.b16 %v297
    %v578 = vunpack.c.l.b16 %v298
    %v579 = vunpack.c.h.b16 %v298
    %v580 = vunpack.c.l.b16 %v299
    %v581 = vunpack.c.h.b16 %v299
    %v582 = vunpack.c.l.b16 %v300
    %v583 = vunpack.c.h.b16 %v300
    %v584 = vunpack.c.l.b16 %v301
    %v585 = vunpack.c.h.b16 %v301
    %v586 = vunpack.c.l.b16 %v302
    %v587 = vunpack.c.h.b16 %v302
    %v588 = vunpack.c.l.b16 %v303
    %v589 = vunpack.c.h.b16 %v303
    %v590 = vunpack.c.l.b16 %v304
    %v591 = vunpack.c.h.b16 %v304
    %v592 = vunpack.c.l.b16 %v305
    %v593 = vunpack.c.h.b16 %v305
    %v594 = vunpack.c.l.b16 %v306
    %v595 = vunpack.c.h.b16 %v306
    %v596 = vunpack.c.l.b16 %v307
    %v597 = vunpack.c.h.b16 %v307
    %v598 = vunpack.c.l.b16 %v308
    %v599 = vunpack.c.h.b16 %v308
    %v600 = vunpack.c.l.b16 %v309
    %v601 = vunpack.c.h.b16 %v309
    %v602 = vunpack.c.l.b16 %v310
    %v603 = vunpack.c.h.b16 %v310
    %v604 = vunpack.c.l.b16 %v311
    %v605 = vunpack.c.h.b16 %v311
    %v606 = vunpack.c.l.b16 %v312
    %v607 = vunpack.c.h.b16 %v312
    %v608 = vunpack.c.l.b16 %v313
    %v609 = vunpack.c.h.b16 %v313
    %v610 = vunpack.c.l.b16 %v314
    %v611 = vunpack.c.h.b16 %v314
    %v612 = vunpack.c.l.b16 %v315
    %v613 = vunpack.c.h.b16 %v315
    %v614 = vunpack.c.l.b16 %v316
    %v615 = vunpack.c.h.b16 %v316
    %v616 = vunpack.c.l.b16 %v317
    %v617 = vunpack.c.h.b16 %v317
    %v618 = vunpack.c.l.b16 %v318
    %v619 = vunpack.c.h.b16 %v318
    %v620 = vunpack.c.l.b16 %v319
    %v621 = vunpack.c.h.b16 %v319
    %v622 = vunpack.c.l.b16 %v320
    %v623 = vunpack.c.h.b16 %v320
    %v624 = vunpack.c.l.b16 %v321
    %v625 = vunpack.c.h.b16 %v321
    %v626 = vunpack.c.l.b16 %v322
    %v627 = vunpack.c.h.b16 %v322
    %v628 = vunpack.c.l.b16 %v323
    %v629 = vunpack.c.h.b16 %v323
    %v630 = vunpack.c.l.b16 %v324
    %v631 = vunpack.c.h.b16 %v324
    %v632 = vunpack.c.l.b16 %v325
    %v633 = vunpack.c.h.b16 %v325
    %v634 = vunpack.c.l.b16 %v326
    %v635 = vunpack.c.h.b16 %v326
    %v636 = vunpack.c.l.b16 %v327
    %v637 = vunpack.c.h.b16 %v327
    %v638 = vunpack.c.l.b16 %v328
    %v639 = vunpack.c.h.b16 %v328
    %v640 = vunpack.c.l.b16 %v329
    %v641 = vunpack.c.h.b16 %v329
    %v642 = vunpack.c.l.b16 %v330
    %v643 = vunpack.c.h.b16 %v330
    %v644 = vunpack.c.l.b16 %v331
    %v645 = vunpack.c.h.b16 %v331
    %v646 = vunpack.c.l.b16 %v332
    %v647 = vunpack.c.h.b16 %v332
    %v648 = vunpack.c.l.b16 %v333
    %v649 = vunpack.c.h.b16 %v333
    %v650 = vunpack.c.l.b16 %v334
    %v651 = vunpack.c.h.b16 %v334
    %v652 = vunpack.c.l.b16 %v335
    %v653 = vunpack.c.h.b16 %v335
    %v654 = vunpack.c.l.b16 %v336
    %v655 = vunpack.c.h.b16 %v336
    %v656 = vunpack.c.l.b16 %v337
    %v657 = vunpack.c.h.b16 %v337
    %v658 = vunpack.c.l.b16 %v338
    %v659 = vunpack.c.h.b16 %v338
    %v660 = vunpack.c.l.b16 %v339
    %v661 = vunpack.c.h.b16 %v339
    %v662 = vunpack.c.l.b16 %v340
    %v663 = vunpack.c.h.b16 %v340
    %v664 = vunpack.c.l.b16 %v341
    %v665 = vunpack.c.h.b16 %v341
    %v666 = vunpack.c.l.b16 %v342
    %v667 = vunpack.c.h.b16 %v342
    %v668 = vunpack.c.l.b16 %v343
    %v669 = vunpack.c.h.b16 %v343
    %v670 = vunpack.c.l.b16 %v344
    %v671 = vunpack.c.h.b16 %v344
    %v672 = vunpack.c.l.b16 %v345
    %v673 = vunpack.c.h.b16 %v345
    %v674 = vunpack.c.l.b16 %v346
    %v675 = vunpack.c.h.b16 %v346
    %v676 = vunpack.c.l.b16 %v347
    %v677 = vunpack.c.h.b16 %v347
    %v678 = vunpack.c.l.b16 %v348
    %v679 = vunpack.c.h.b16 %v348
    %v680 = vunpack.c.l.b16 %v349
    %v681 = vunpack.c.h.b16 %v349
    %v682 = vunpack.c.l.b16 %v350
    %v683 = vunpack.c.h.b16 %v350
    %v684 = vunpack.c.l.b16 %v351
    %v685 = vunpack.c.h.b16 %v351
    %v686 = vunpack.c.l.b16 %v352
    %v687 = vunpack.c.h.b16 %v352
    %v688 = vunpack.c.l.b16 %v353
    %v689 = vunpack.c.h.b16 %v353
    %v690 = vunpack.c.l.b16 %v354
    %v691 = vunpack.c.h.b16 %v354
    %v692 = vunpack.c.l.b16 %v355
    %v693 = vunpack.c.h.b16 %v355
    %v694 = vunpack.c.l.b16 %v356
    %v695 = vunpack.c.h.b16 %v356
    %v696 = vunpack.c.l.b16 %v357
    %v697 = vunpack.c.h.b16 %v357
    %v698 = vunpack.c.l.b16 %v358
    %v699 = vunpack.c.h.b16 %v358
    %v700 = vunpack.c.l.b16 %v359
    %v701 = vunpack.c.h.b16 %v359
    %v702 = vunpack.c.l.b16 %v360
    %v703 = vunpack.c.h.b16 %v360
    %v704 = vunpack.c.l.b16 %v361
    %v705 = vunpack.c.h.b16 %v361
    %v706 = vunpack.c.l.b16 %v362
    %v707 = vunpack.c.h.b16 %v362
    %v708 = vunpack.c.l.b16 %v363
    %v709 = vunpack.c.h.b16 %v363
    %v710 = vunpack.c.l.b16 %v364
    %v711 = vunpack.c.h.b16 %v364
    %v712 = vunpack.c.l.b16 %v365
    %v713 = vunpack.c.h.b16 %v365
    %v714 = vunpack.c.l.b16 %v366
    %v715 = vunpack.c.h.b16 %v366
    %v716 = vunpack.c.l.b16 %v367
    %v717 = vunpack.c.h.b16 %v367
    %v718 = vunpack.c.l.b16 %v368
    %v719 = vunpack.c.h.b16 %v368
    %v720 = vunpack.c.l.b16 %v369
    %v721 = vunpack.c.h.b16 %v369
    %v722 = vunpack.c.l.b16 %v370
    %v723 = vunpack.c.h.b16 %v370
    %v724 = vunpack.c.l.b16 %v371
    %v725 = vunpack.c.h.b16 %v371
    %v726 = vunpack.c.l.b16 %v372
    %v727 = vunpack.c.h.b16 %v372
    %v728 = vunpack.c.l.b16 %v373
    %v729 = vunpack.c.h.b16 %v373
    %v730 = vunpack.c.l.b16 %v374
    %v731 = vunpack.c.h.b16 %v374
    %v732 = vunpack.c.l.b16 %v375
    %v733 = vunpack.c.h.b16 %v375
    %v734 = vunpack.c.l.b16 %v376
    %v735 = vunpack.c.h.b16 %v376
    %v736 = vunpack.c.l.b16 %v377
    %v737 = vunpack.c.h.b16 %v377
    %v738 = vunpack.c.l.b16 %v378
    %v739 = vunpack.c.h.b16 %v378
    %v740 = vunpack.c.l.b16 %v379
    %v741 = vunpack.c.h.b16 %v379
    %v742 = vunpack.c.l.b16 %v380
    %v743 = vunpack.c.h.b16 %v380
    %v744 = vunpack.c.l.b16 %v381
    %v745 = vunpack.c.h.b16 %v381
    %v746 = vunpack.c.l.b16 %v382
    %v747 = vunpack.c.h.b16 %v382
    %v748 = vunpack.c.l.b16 %v383
    %v749 = vunpack.c.h.b16 %v383
    %v750 = vunpack.c.l.b16 %v384
    %v751 = vunpack.c.h.b16 %v384
    %v752 = vunpack.c.l.b16 %v385
    %v753 = vunpack.c.h.b16 %v385
    %v754 = vunpack.c.l.b16 %v386
    %v755 = vunpack.c.h.b16 %v386
    %v756 = vunpack.c.l.b16 %v387
    %v757 = vunpack.c.h.b16 %v387
    %v758 = vunpack.c.l.b16 %v388
    %v759 = vunpack.c.h.b16 %v388
    %v760 = vunpack.c.l.b16 %v389
    %v761 = vunpack.c.h.b16 %v389
    %v762 = vunpack.c.l.b16 %v390
    %v763 = vunpack.c.h.b16 %v390
    %v764 = vunpack.c.l.b16 %v391
    %v765 = vunpack.c.h.b16 %v391
    %v766 = vunpack.c.l.b16 %v392
    %v767 = vunpack.c.h.b16 %v392
    %v768 = vunpack.c.l.b16 %v393
    %v769 = vunpack.c.h.b16 %v393
    %v770 = vunpack.c.l.b16 %v394
    %v771 = vunpack.c.h.b16 %v394
    %v772 = vunpack.c.l.b16 %v395
    %v773 = vunpack.c.h.b16 %v395
    %v774 = vunpack.c.l.b16 %v396
    %v775 = vunpack.c.h.b16 %v396
    %v776 = vunpack.c.l.b16 %v397
    %v777 = vunpack.c.h.b16 %v397
    %v778 = vunpack.c.l.b16 %v398
    %v779 = vunpack.c.h.b16 %v398
    %v780 = vunpack.c.l.b16 %v399
    %v781 = vunpack.c.h.b16 %v399
    %v782 = vunpack.c.l.b16 %v400
    %v783 = vunpack.c.h.b16 %v400
    %v784 = vunpack.c.l.b16 %v401
    %v785 = vunpack.c.h.b16 %v401
    %v786 = vunpack.c.l.b16 %v402
    %v787 = vunpack.c.h.b16 %v402
    %v788 = vunpack.c.l.b16 %v403
    %v789 = vunpack.c.h.b16 %v403
    %v790 = vunpack.c.l.b16 %v404
    %v791 = vunpack.c.h.b16 %v404
    %v792 = vunpack.c.l.b16 %v405
    %v793 = vunpack.c.h.b16 %v405
    %v794 = vunpack.c.l.b16 %v406
    %v795 = vunpack.c.h.b16 %v406
    %v796 = vunpack.c.l.b16 %v407
    %v797 = vunpack.c.h.b16 %v407
    %v798 = vunpack.c.l.b16 %v408
    %v799 = vunpack.c.h.b16 %v408
    %v800 = vunpack.c.l.b16 %v409
    %v801 = vunpack.c.h.b16 %v409
    %v802 = vunpack.c.l.b16 %v410
    %v803 = vunpack.c.h.b16 %v410
    %v804 = vunpack.c.l.b16 %v411
    %v805 = vunpack.c.h.b16 %v411
    %v806 = vunpack.c.l.b16 %v412
    %v807 = vunpack.c.h.b16 %v412
    %v808 = vunpack.c.l.b16 %v413
    %v809 = vunpack.c.h.b16 %v413
    %v810 = vpack.c.b16 %v556, %v554
    %v811 = vpack.c.b16 %v557, %v555
    %v812 = vpack.c.b16 %v560, %v558
    %v813 = vpack.c.b16 %v561, %v559
    %v814 = vpack.c.b16 %v564, %v562
    %v815 = vpack.c.b16 %v565, %v563
    %v816 = vpack.c.b16 %v568, %v566
    %v817 = vpack.c.b16 %v569, %v567
    %v818 = vpack.c.b16 %v572, %v570
    %v819 = vpack.c.b16 %v573, %v571
    %v820 = vpack.c.b16 %v576, %v574
    %v821 = vpack.c.b16 %v577, %v575
    %v822 = vpack.c.b16 %v580, %v578
    %v823 = vpack.c.b16 %v581, %v579
    %v824 = vpack.c.b16 %v584, %v582
    %v825 = vpack.c.b16 %v585, %v583
    %v826 = vpack.c.b16 %v588, %v586
    %v827 = vpack.c.b16 %v589, %v587
    %v828 = vpack.c.b16 %v592, %v590
    %v829 = vpack.c.b16 %v593, %v591
    %v830 = vpack.c.b16 %v596, %v594
    %v831 = vpack.c.b16 %v597, %v595
    %v832 = vpack.c.b16 %v600, %v598
    %v833 = vpack.c.b16 %v601, %v599
    %v834 = vpack.c.b16 %v604, %v602
    %v835 = vpack.c.b16 %v605, %v603
    %v836 = vpack.c.b16 %v608, %v606
    %v837 = vpack.c.b16 %v609, %v607
    %v838 = vpack.c.b16 %v612, %v610
    %v839 = vpack.c.b16 %v613, %v611
    %v840 = vpack.c.b16 %v616, %v614
    %v841 = vpack.c.b16 %v617, %v615
    %v842 = vpack.c.b16 %v620, %v618
    %v843 = vpack.c.b16 %v621, %v619
    %v844 = vpack.c.b16 %v624, %v622
    %v845 = vpack.c.b16 %v625, %v623
    %v846 = vpack.c.b16 %v628, %v626
    %v847 = vpack.c.b16 %v629, %v627
    %v848 = vpack.c.b16 %v632, %v630
    %v849 = vpack.c.b16 %v633, %v631
    %v850 = vpack.c.b16 %v636, %v634
    %v851 = vpack.c.b16 %v637, %v635
    %v852 = vpack.c.b16 %v640, %v638
    %v853 = vpack.c.b16 %v641, %v639
    %v854 = vpack.c.b16 %v644, %v642
    %v855 = vpack.c.b16 %v645, %v643
    %v856 = vpack.c.b16 %v648, %v646
    %v857 = vpack.c.b16 %v649, %v647
    %v858 = vpack.c.b16 %v652, %v650
    %v859 = vpack.c.b16 %v653, %v651
    %v860 = vpack.c.b16 %v656, %v654
    %v861 = vpack.c.b16 %v657, %v655
    %v862 = vpack.c.b16 %v660, %v658
    %v863 = vpack.c.b16 %v661, %v659
    %v864 = vpack.c.b16 %v664, %v662
    %v865 = vpack.c.b16 %v665, %v663
    %v866 = vpack.c.b16 %v668, %v666
    %v867 = vpack.c.b16 %v669, %v667
    %v868 = vpack.c.b16 %v672, %v670
    %v869 = vpack.c.b16 %v673, %v671
    %v870 = vpack.c.b16 %v676, %v674
    %v871 = vpack.c.b16 %v677, %v675
    %v872 = vpack.c.b16 %v680, %v678
    %v873 = vpack.c.b16 %v681, %v679
    %v874 = vpack.c.b16 %v684, %v682
    %v875 = vpack.c.b16 %v685, %v683
    %v876 = vpack.c.b16 %v688, %v686
    %v877 = vpack.c.b16 %v689, %v687
    %v878 = vpack.c.b16 %v692, %v690
    %v879 = vpack.c.b16 %v693, %v691
    %v880 = vpack.c.b16 %v696, %v694
    %v881 = vpack.c.b16 %v697, %v695
    %v882 = vpack.c.b16 %v700, %v698
    %v883 = vpack.c.b16 %v701, %v699
    %v884 = vpack.c.b16 %v704, %v702
    %v885 = vpack.c.b16 %v705, %v703
    %v886 = vpack.c.b16 %v708, %v706
    %v887 = vpack.c.b16 %v709, %v707
    %v888 = vpack.c.b16 %v712, %v710
    %v889 = vpack.c.b16 %v713, %v711
    %v890 = vpack.c.b16 %v716, %v714
    %v891 = vpack.c.b16 %v717, %v715
    %v892 = vpack.c.b16 %v720, %v718
    %v893 = vpack.c.b16 %v721, %v719
    %v894 = vpack.c.b16 %v724, %v722
    %v895 = vpack.c.b16 %v725, %v723
    %v896 = vpack.c.b16 %v728, %v726
    %v897 = vpack.c.b16 %v729, %v727
    %v898 = vpack.c.b16 %v732, %v730
    %v899 = vpack.c.b16 %v733, %v731
    %v900 = vpack.c.b16 %v736, %v734
    %v901 = vpack.c.b16 %v737, %v735
    %v902 = vpack.c.b16 %v740, %v738
    %v903 = vpack.c.b16 %v741, %v739
    %v904 = vpack.c.b16 %v744, %v742
    %v905 = vpack.c.b16 %v745, %v743
    %v906 = vpack.c.b16 %v748, %v746
    %v907 = vpack.c.b16 %v749, %v747
    %v908 = vpack.c.b16 %v752, %v750
    %v909 = vpack.c.b16 %v753, %v751
    %v910 = vpack.c.b16 %v756, %v754
    %v911 = vpack.c.b16 %v757, %v755
    %v912 = vpack.c.b16 %v760, %v758
    %v913 = vpack.c.b16 %v761, %v759
    %v914 = vpack.c.b16 %v764, %v762
    %v915 = vpack.c.b16 %v765, %v763
    %v916 = vpack.c.b16 %v768, %v766
    %v917 = vpack.c.b16 %v769, %v767
    %v918 = vpack.c.b16 %v772, %v770
    %v919 = vpack.c.b16 %v773, %v771
    %v920 = vpack.c.b16 %v776, %v774
    %v921 = vpack.c.b16 %v777, %v775
    %v922 = vpack.c.b16 %v780, %v778
    %v923 = vpack.c.b16 %v781, %v779
    %v924 = vpack.c.b16 %v784, %v782
    %v925 = vpack.c.b16 %v785, %v783
    %v926 = vpack.c.b16 %v788, %v786
    %v927 = vpack.c.b16 %v789, %v787
    %v928 = vpack.c.b16 %v792, %v790
    %v929 = vpack.c.b16 %v793, %v791
    %v930 = vpack.c.b16 %v796, %v794
    %v931 = vpack.c.b16 %v797, %v795
    %v932 = vpack.c.b16 %v800, %v798
    %v933 = vpack.c.b16 %v801, %v799
    %v934 = vpack.c.b16 %v804, %v802
    %v935 = vpack.c.b16 %v805, %v803
    %v936 = vpack.c.b16 %v808, %v806
    %v937 = vpack.c.b16 %v809, %v807
    %1066 = vmatprep.subr.bf16.mxu0 %v811
    %1067 = vmatpush1.bf16.msra.mxu0 %v810
    %1068 = vmatprep.subr.bf16.mxu0 %v813
    %1069 = vmatpush1.bf16.msra.mxu0 %v812
    %1070 = vmatprep.subr.bf16.mxu0 %v815
    %1071 = vmatpush1.bf16.msra.mxu0 %v814
    %1072 = vmatprep.subr.bf16.mxu0 %v817
    %1073 = vmatpush1.bf16.msra.mxu0 %v816
    %1074 = vmatprep.subr.bf16.mxu0 %v819
    %1075 = vmatpush1.bf16.msra.mxu0 %v818
    %1076 = vmatprep.subr.bf16.mxu0 %v821
    %1077 = vmatpush1.bf16.msra.mxu0 %v820
    %1078 = vmatprep.subr.bf16.mxu0 %v823
    %1079 = vmatpush1.bf16.msra.mxu0 %v822
    %1080 = vmatprep.subr.bf16.mxu0 %v825
    %1081 = vmatpush1.bf16.msra.mxu0 %v824
    %1082 = vmatprep.subr.bf16.mxu0 %v827
    %1083 = vmatpush1.bf16.msra.mxu0 %v826
    %1084 = vmatprep.subr.bf16.mxu0 %v829
    %1085 = vmatpush1.bf16.msra.mxu0 %v828
    %1086 = vmatprep.subr.bf16.mxu0 %v831
    %1087 = vmatpush1.bf16.msra.mxu0 %v830
    %1088 = vmatprep.subr.bf16.mxu0 %v833
    %1089 = vmatpush1.bf16.msra.mxu0 %v832
    %1090 = vmatprep.subr.bf16.mxu0 %v835
    %1091 = vmatpush1.bf16.msra.mxu0 %v834
    %1092 = vmatprep.subr.bf16.mxu0 %v837
    %1093 = vmatpush1.bf16.msra.mxu0 %v836
    %1094 = vmatprep.subr.bf16.mxu0 %v839
    %1095 = vmatpush1.bf16.msra.mxu0 %v838
    %1096 = vmatprep.subr.bf16.mxu0 %v841
    %1097 = vmatpush1.bf16.msra.mxu0 %v840
    %1098 = vmatprep.mubr.bf16.mxu0 %v279
    %1099 = vmatmul.mubr.bf16.gmra.mrb[0].mxu0 %v278
    %v1100 = vpop.f32.mrb[0].mxu0
    %v1101 = vadd.f32 %v419, %v1100
    %v1102 = vpop.f32.mrb[0].mxu0
    %v1103 = vadd.f32 %v423, %v1102
    %v1104 = vpop.f32.mrb[0].mxu0
    %v1105 = vadd.f32 %v419, %v1104
    %v1106 = vpop.f32.mrb[0].mxu0
    %v1107 = vadd.f32 %v423, %v1106
    %1108 = vdwg.mxu0
    %1109 = vmatprep.subr.bf16.mxu0 %v843
    %1110 = vmatpush1.bf16.msra.mxu0 %v842
    %1111 = vmatprep.subr.bf16.mxu0 %v845
    %1112 = vmatpush1.bf16.msra.mxu0 %v844
    %1113 = vmatprep.subr.bf16.mxu0 %v847
    %1114 = vmatpush1.bf16.msra.mxu0 %v846
    %1115 = vmatprep.subr.bf16.mxu0 %v849
    %1116 = vmatpush1.bf16.msra.mxu0 %v848
    %1117 = vmatprep.subr.bf16.mxu0 %v851
    %1118 = vmatpush1.bf16.msra.mxu0 %v850
    %1119 = vmatprep.subr.bf16.mxu0 %v853
    %1120 = vmatpush1.bf16.msra.mxu0 %v852
    %1121 = vmatprep.subr.bf16.mxu0 %v855
    %1122 = vmatpush1.bf16.msra.mxu0 %v854
    %1123 = vmatprep.subr.bf16.mxu0 %v857
    %1124 = vmatpush1.bf16.msra.mxu0 %v856
    %1125 = vmatprep.subr.bf16.mxu0 %v859
    %1126 = vmatpush1.bf16.msra.mxu0 %v858
    %1127 = vmatprep.subr.bf16.mxu0 %v861
    %1128 = vmatpush1.bf16.msra.mxu0 %v860
    %1129 = vmatprep.subr.bf16.mxu0 %v863
    %1130 = vmatpush1.bf16.msra.mxu0 %v862
    %1131 = vmatprep.subr.bf16.mxu0 %v865
    %1132 = vmatpush1.bf16.msra.mxu0 %v864
    %1133 = vmatprep.subr.bf16.mxu0 %v867
    %1134 = vmatpush1.bf16.msra.mxu0 %v866
    %1135 = vmatprep.subr.bf16.mxu0 %v869
    %1136 = vmatpush1.bf16.msra.mxu0 %v868
    %1137 = vmatprep.subr.bf16.mxu0 %v871
    %1138 = vmatpush1.bf16.msra.mxu0 %v870
    %1139 = vmatprep.subr.bf16.mxu0 %v873
    %1140 = vmatpush1.bf16.msra.mxu0 %v872
    %1141 = vmatprep.mubr.bf16.mxu0 %v281
    %1142 = vmatmul.mubr.bf16.gmra.mrb[0].mxu0 %v280
    %v1143 = vpop.f32.mrb[0].mxu0
    %v1144 = vadd.f32 %v1101, %v1143
    %v1145 = vpop.f32.mrb[0].mxu0
    %v1146 = vadd.f32 %v1103, %v1145
    %v1147 = vpop.f32.mrb[0].mxu0
    %v1148 = vadd.f32 %v1105, %v1147
    %v1149 = vpop.f32.mrb[0].mxu0
    %v1150 = vadd.f32 %v1107, %v1149
    %1151 = vdwg.mxu0
    %1152 = vmatprep.subr.bf16.mxu0 %v875
    %1153 = vmatpush1.bf16.msra.mxu0 %v874
    %1154 = vmatprep.subr.bf16.mxu0 %v877
    %1155 = vmatpush1.bf16.msra.mxu0 %v876
    %1156 = vmatprep.subr.bf16.mxu0 %v879
    %1157 = vmatpush1.bf16.msra.mxu0 %v878
    %1158 = vmatprep.subr.bf16.mxu0 %v881
    %1159 = vmatpush1.bf16.msra.mxu0 %v880
    %1160 = vmatprep.subr.bf16.mxu0 %v883
    %1161 = vmatpush1.bf16.msra.mxu0 %v882
    %1162 = vmatprep.subr.bf16.mxu0 %v885
    %1163 = vmatpush1.bf16.msra.mxu0 %v884
    %1164 = vmatprep.subr.bf16.mxu0 %v887
    %1165 = vmatpush1.bf16.msra.mxu0 %v886
    %1166 = vmatprep.subr.bf16.mxu0 %v889
    %1167 = vmatpush1.bf16.msra.mxu0 %v888
    %1168 = vmatprep.subr.bf16.mxu0 %v891
    %1169 = vmatpush1.bf16.msra.mxu0 %v890
    %1170 = vmatprep.subr.bf16.mxu0 %v893
    %1171 = vmatpush1.bf16.msra.mxu0 %v892
    %1172 = vmatprep.subr.bf16.mxu0 %v895
    %1173 = vmatpush1.bf16.msra.mxu0 %v894
    %1174 = vmatprep.subr.bf16.mxu0 %v897
    %1175 = vmatpush1.bf16.msra.mxu0 %v896
    %1176 = vmatprep.subr.bf16.mxu0 %v899
    %1177 = vmatpush1.bf16.msra.mxu0 %v898
    %1178 = vmatprep.subr.bf16.mxu0 %v901
    %1179 = vmatpush1.bf16.msra.mxu0 %v900
    %1180 = vmatprep.subr.bf16.mxu0 %v903
    %1181 = vmatpush1.bf16.msra.mxu0 %v902
    %1182 = vmatprep.subr.bf16.mxu0 %v905
    %1183 = vmatpush1.bf16.msra.mxu0 %v904
    %1184 = vmatprep.mubr.bf16.mxu0 %v283
    %1185 = vmatmul.mubr.bf16.gmra.mrb[0].mxu0 %v282
    %v1186 = vpop.f32.mrb[0].mxu0
    %v1187 = vadd.f32 %v1144, %v1186
    %v1188 = vpop.f32.mrb[0].mxu0
    %v1189 = vadd.f32 %v1146, %v1188
    %v1190 = vpop.f32.mrb[0].mxu0
    %v1191 = vadd.f32 %v1148, %v1190
    %v1192 = vpop.f32.mrb[0].mxu0
    %v1193 = vadd.f32 %v1150, %v1192
    %1194 = vdwg.mxu0
    %1195 = vmatprep.subr.bf16.mxu0 %v907
    %1196 = vmatpush1.bf16.msra.mxu0 %v906
    %1197 = vmatprep.subr.bf16.mxu0 %v909
    %1198 = vmatpush1.bf16.msra.mxu0 %v908
    %1199 = vmatprep.subr.bf16.mxu0 %v911
    %1200 = vmatpush1.bf16.msra.mxu0 %v910
    %1201 = vmatprep.subr.bf16.mxu0 %v913
    %1202 = vmatpush1.bf16.msra.mxu0 %v912
    %1203 = vmatprep.subr.bf16.mxu0 %v915
    %1204 = vmatpush1.bf16.msra.mxu0 %v914
    %1205 = vmatprep.subr.bf16.mxu0 %v917
    %1206 = vmatpush1.bf16.msra.mxu0 %v916
    %1207 = vmatprep.subr.bf16.mxu0 %v919
    %1208 = vmatpush1.bf16.msra.mxu0 %v918
    %1209 = vmatprep.subr.bf16.mxu0 %v921
    %1210 = vmatpush1.bf16.msra.mxu0 %v920
    %1211 = vmatprep.subr.bf16.mxu0 %v923
    %1212 = vmatpush1.bf16.msra.mxu0 %v922
    %1213 = vmatprep.subr.bf16.mxu0 %v925
    %1214 = vmatpush1.bf16.msra.mxu0 %v924
    %1215 = vmatprep.subr.bf16.mxu0 %v927
    %1216 = vmatpush1.bf16.msra.mxu0 %v926
    %1217 = vmatprep.subr.bf16.mxu0 %v929
    %1218 = vmatpush1.bf16.msra.mxu0 %v928
    %1219 = vmatprep.subr.bf16.mxu0 %v931
    %1220 = vmatpush1.bf16.msra.mxu0 %v930
    %1221 = vmatprep.subr.bf16.mxu0 %v933
    %1222 = vmatpush1.bf16.msra.mxu0 %v932
    %1223 = vmatprep.subr.bf16.mxu0 %v935
    %1224 = vmatpush1.bf16.msra.mxu0 %v934
    %1225 = vmatprep.subr.bf16.mxu0 %v937
    %1226 = vmatpush1.bf16.msra.mxu0 %v936
    %1227 = vmatprep.mubr.bf16.mxu0 %v285
    %1228 = vmatmul.mubr.bf16.gmra.mrb[0].mxu0 %v284
    %v1229 = vpop.f32.mrb[0].mxu0
    %v1230 = vadd.f32 %v1187, %v1229
    %v1231 = vpop.f32.mrb[0].mxu0
    %v1232 = vadd.f32 %v1189, %v1231
    %v1233 = vpop.f32.mrb[0].mxu0
    %v1234 = vadd.f32 %v1191, %v1233
    %v1235 = vpop.f32.mrb[0].mxu0
    %v1236 = vadd.f32 %v1193, %v1235
    %1237 = vdwg.mxu0
    %v1238 = vmax.f32 %v1230, 0.0
    %v1239 = vmax.f32 %v1232, 0.0
    %v1240 = vmax.f32 %v1234, 0.0
    %v1241 = vmax.f32 %v1236, 0.0
    %v1242 = vpack.c.bf16 %v1240, %v1238
    %v1243 = vpack.c.bf16 %v1241, %v1239
    %v1244 = vld [vmem:[#allocation7] sm:$0xf]
    %v1245 = vld [vmem:[#allocation7 + $0x4] sm:$0xf]
    %v1246 = vld [vmem:[#allocation7 + $0x8] sm:$0xf]
    %v1247 = vld [vmem:[#allocation7 + $0xc] sm:$0xf]
    %v1248 = vld [vmem:[#allocation7 + $0x10] sm:$0xf]
    %v1249 = vld [vmem:[#allocation7 + $0x14] sm:$0xf]
    %v1250 = vld [vmem:[#allocation7 + $0x18] sm:$0xf]
    %v1251 = vld [vmem:[#allocation7 + $0x1c] sm:$0xf]
    %v1252 = vld [vmem:[#allocation7 + $0x20] sm:$0xf]
    %v1253 = vld [vmem:[#allocation7 + $0x24] sm:$0xf]
    %v1254 = vld [vmem:[#allocation7 + $0x28] sm:$0xf]
    %v1255 = vld [vmem:[#allocation7 + $0x2c] sm:$0xf]
    %v1256 = vld [vmem:[#allocation7 + $0x30] sm:$0xf]
    %v1257 = vld [vmem:[#allocation7 + $0x34] sm:$0xf]
    %v1258 = vld [vmem:[#allocation7 + $0x38] sm:$0xf]
    %v1259 = vld [vmem:[#allocation7 + $0x3c] sm:$0xf]
    %v1260 = vld [vmem:[#allocation7 + $0x40] sm:$0xf]
    %v1261 = vld [vmem:[#allocation7 + $0x44] sm:$0xf]
    %v1262 = vld [vmem:[#allocation7 + $0x48] sm:$0xf]
    %v1263 = vld [vmem:[#allocation7 + $0x4c] sm:$0xf]
    %v1264 = vld [vmem:[#allocation7 + $0x50] sm:$0xf]
    %v1265 = vld [vmem:[#allocation7 + $0x54] sm:$0xf]
    %v1266 = vld [vmem:[#allocation7 + $0x58] sm:$0xf]
    %v1267 = vld [vmem:[#allocation7 + $0x5c] sm:$0xf]
    %v1268 = vld [vmem:[#allocation7 + $0x60] sm:$0xf]
    %v1269 = vld [vmem:[#allocation7 + $0x64] sm:$0xf]
    %v1270 = vld [vmem:[#allocation7 + $0x68] sm:$0xf]
    %v1271 = vld [vmem:[#allocation7 + $0x6c] sm:$0xf]
    %v1272 = vld [vmem:[#allocation7 + $0x70] sm:$0xf]
    %v1273 = vld [vmem:[#allocation7 + $0x74] sm:$0xf]
    %v1274 = vld [vmem:[#allocation7 + $0x78] sm:$0xf]
    %v1275 = vld [vmem:[#allocation7 + $0x7c] sm:$0xf]
    %v1276 = vld [vmem:[%s4] sm:$0x1]
    %v1278 = vlaneseq
    %v1279 = vshrl.u32 %v1278, 7
    %v1280 = vsub.s32 0, %v1279
    %v1281 = vrot.slane %v1276, %v1280
    %v1315 = vunpack.c.l.b16 %v1244
    %v1316 = vunpack.c.l.b16 %v1245
    %v1317 = vunpack.c.l.b16 %v1246
    %v1318 = vunpack.c.l.b16 %v1247
    %v1319 = vunpack.c.l.b16 %v1248
    %v1320 = vunpack.c.l.b16 %v1249
    %v1321 = vunpack.c.l.b16 %v1250
    %v1322 = vunpack.c.l.b16 %v1251
    %v1323 = vunpack.c.l.b16 %v1252
    %v1324 = vunpack.c.l.b16 %v1253
    %v1325 = vunpack.c.l.b16 %v1254
    %v1326 = vunpack.c.l.b16 %v1255
    %v1327 = vunpack.c.l.b16 %v1256
    %v1328 = vunpack.c.l.b16 %v1257
    %v1329 = vunpack.c.l.b16 %v1258
    %v1330 = vunpack.c.l.b16 %v1259
    %v1331 = vunpack.c.l.b16 %v1260
    %v1332 = vunpack.c.l.b16 %v1261
    %v1333 = vunpack.c.l.b16 %v1262
    %v1334 = vunpack.c.l.b16 %v1263
    %v1335 = vunpack.c.l.b16 %v1264
    %v1336 = vunpack.c.l.b16 %v1265
    %v1337 = vunpack.c.l.b16 %v1266
    %v1338 = vunpack.c.l.b16 %v1267
    %v1339 = vunpack.c.l.b16 %v1268
    %v1340 = vunpack.c.l.b16 %v1269
    %v1341 = vunpack.c.l.b16 %v1270
    %v1342 = vunpack.c.l.b16 %v1271
    %v1343 = vunpack.c.l.b16 %v1272
    %v1344 = vunpack.c.l.b16 %v1273
    %v1345 = vunpack.c.l.b16 %v1274
    %v1346 = vunpack.c.l.b16 %v1275
    %v1347 = vpack.c.b16 %v1316, %v1315
    %v1348 = vpack.c.b16 %v1318, %v1317
    %v1349 = vpack.c.b16 %v1320, %v1319
    %v1350 = vpack.c.b16 %v1322, %v1321
    %v1351 = vpack.c.b16 %v1324, %v1323
    %v1352 = vpack.c.b16 %v1326, %v1325
    %v1353 = vpack.c.b16 %v1328, %v1327
    %v1354 = vpack.c.b16 %v1330, %v1329
    %v1355 = vpack.c.b16 %v1332, %v1331
    %v1356 = vpack.c.b16 %v1334, %v1333
    %v1357 = vpack.c.b16 %v1336, %v1335
    %v1358 = vpack.c.b16 %v1338, %v1337
    %v1359 = vpack.c.b16 %v1340, %v1339
    %v1360 = vpack.c.b16 %v1342, %v1341
    %v1361 = vpack.c.b16 %v1344, %v1343
    %v1362 = vpack.c.b16 %v1346, %v1345
    %1379 = vmatprep.subr.bf16.mxu0 0
    %1380 = vmatpush1.bf16.msra.mxu0 %v1347
    %1381 = vmatprep.subr.bf16.mxu0 0
    %1382 = vmatpush1.bf16.msra.mxu0 %v1348
    %1383 = vmatprep.subr.bf16.mxu0 0
    %1384 = vmatpush1.bf16.msra.mxu0 %v1349
    %1385 = vmatprep.subr.bf16.mxu0 0
    %1386 = vmatpush1.bf16.msra.mxu0 %v1350
    %1387 = vmatprep.subr.bf16.mxu0 0
    %1388 = vmatpush1.bf16.msra.mxu0 %v1351
    %1389 = vmatprep.subr.bf16.mxu0 0
    %1390 = vmatpush1.bf16.msra.mxu0 %v1352
    %1391 = vmatprep.subr.bf16.mxu0 0
    %1392 = vmatpush1.bf16.msra.mxu0 %v1353
    %1393 = vmatprep.subr.bf16.mxu0 0
    %1394 = vmatpush1.bf16.msra.mxu0 %v1354
    %1395 = vmatprep.subr.bf16.mxu0 0
    %1396 = vmatpush1.bf16.msra.mxu0 %v1355
    %1397 = vmatprep.subr.bf16.mxu0 0
    %1398 = vmatpush1.bf16.msra.mxu0 %v1356
    %1399 = vmatprep.subr.bf16.mxu0 0
    %1400 = vmatpush1.bf16.msra.mxu0 %v1357
    %1401 = vmatprep.subr.bf16.mxu0 0
    %1402 = vmatpush1.bf16.msra.mxu0 %v1358
    %1403 = vmatprep.subr.bf16.mxu0 0
    %1404 = vmatpush1.bf16.msra.mxu0 %v1359
    %1405 = vmatprep.subr.bf16.mxu0 0
    %1406 = vmatpush1.bf16.msra.mxu0 %v1360
    %1407 = vmatprep.subr.bf16.mxu0 0
    %1408 = vmatpush1.bf16.msra.mxu0 %v1361
    %1409 = vmatprep.subr.bf16.mxu0 0
    %1410 = vmatpush1.bf16.msra.mxu0 %v1362
    %1411 = vmatprep.mubr.bf16.mxu0 %v1243
    %1412 = vmatmul.mubr.bf16.gmra.mrb[0].mxu0 %v1242
    %v1413 = vpop.f32.mrb[0].mxu0
    %v1414 = vadd.f32 %v1281, %v1413
    %v1415 = vpop.f32.mrb[0].mxu0
    %v1416 = vpop.f32.mrb[0].mxu0
    %v1417 = vadd.f32 %v1281, %v1416
    %v1418 = vpop.f32.mrb[0].mxu0
    %1419 = vdwg.mxu0
    %v1420 = vmax.f32 %v1414, 0.0
    %v1421 = vmax.f32 %v1417, 0.0
    %v1422 = vpack.c.bf16 %v1421, %v1420
    %v1423 = vld [vmem:[#allocation8] sm:$0xf]
    %v1424 = vld [vmem:[#allocation8 + $0x4] sm:$0xf]
    %v1425 = vld [vmem:[#allocation8 + $0x8] sm:$0xf]
    %v1426 = vld [vmem:[#allocation8 + $0xc] sm:$0xf]
    %v1427 = vld [vmem:[#allocation8 + $0x10] sm:$0xf]
    %v1428 = vld [vmem:[#allocation8 + $0x14] sm:$0xf]
    %v1429 = vld [vmem:[#allocation8 + $0x18] sm:$0xf]
    %v1430 = vld [vmem:[#allocation8 + $0x1c] sm:$0xf]
    %v1431 = vld [vmem:[#allocation8 + $0x20] sm:$0xf]
    %v1432 = vld [vmem:[#allocation8 + $0x24] sm:$0xf]
    %v1433 = vld [vmem:[#allocation8 + $0x28] sm:$0xf]
    %v1434 = vld [vmem:[#allocation8 + $0x2c] sm:$0xf]
    %v1435 = vld [vmem:[#allocation8 + $0x30] sm:$0xf]
    %v1436 = vld [vmem:[#allocation8 + $0x34] sm:$0xf]
    %v1437 = vld [vmem:[#allocation8 + $0x38] sm:$0xf]
    %v1438 = vld [vmem:[#allocation8 + $0x3c] sm:$0xf]
    %v1439 = vld [vmem:[%s6] sm:$0x1]
    %v1441 = vlaneseq
    %v1442 = vshrl.u32 %v1441, 7
    %v1443 = vsub.s32 0, %v1442
    %v1444 = vrot.slane %v1439, %v1443
    %v1462 = vunpack.c.l.b16 %v1423
    %v1463 = vunpack.c.l.b16 %v1424
    %v1464 = vunpack.c.l.b16 %v1425
    %v1465 = vunpack.c.l.b16 %v1426
    %v1466 = vunpack.c.l.b16 %v1427
    %v1467 = vunpack.c.l.b16 %v1428
    %v1468 = vunpack.c.l.b16 %v1429
    %v1469 = vunpack.c.l.b16 %v1430
    %v1470 = vunpack.c.l.b16 %v1431
    %v1471 = vunpack.c.l.b16 %v1432
    %v1472 = vunpack.c.l.b16 %v1433
    %v1473 = vunpack.c.l.b16 %v1434
    %v1474 = vunpack.c.l.b16 %v1435
    %v1475 = vunpack.c.l.b16 %v1436
    %v1476 = vunpack.c.l.b16 %v1437
    %v1477 = vunpack.c.l.b16 %v1438
    %v1478 = vpack.c.b16 %v1463, %v1462
    %v1479 = vpack.c.b16 %v1465, %v1464
    %v1480 = vpack.c.b16 %v1467, %v1466
    %v1481 = vpack.c.b16 %v1469, %v1468
    %v1482 = vpack.c.b16 %v1471, %v1470
    %v1483 = vpack.c.b16 %v1473, %v1472
    %v1484 = vpack.c.b16 %v1475, %v1474
    %v1485 = vpack.c.b16 %v1477, %v1476
    %1494 = vmatprep.subr.bf16.mxu0 0
    %1495 = vmatpush1.bf16.msra.mxu0 %v1478
    %1496 = vmatprep.subr.bf16.mxu0 0
    %1497 = vmatpush1.bf16.msra.mxu0 %v1479
    %1498 = vmatprep.subr.bf16.mxu0 0
    %1499 = vmatpush1.bf16.msra.mxu0 %v1480
    %1500 = vmatprep.subr.bf16.mxu0 0
    %1501 = vmatpush1.bf16.msra.mxu0 %v1481
    %1502 = vmatprep.subr.bf16.mxu0 0
    %1503 = vmatpush1.bf16.msra.mxu0 %v1482
    %1504 = vmatprep.subr.bf16.mxu0 0
    %1505 = vmatpush1.bf16.msra.mxu0 %v1483
    %1506 = vmatprep.subr.bf16.mxu0 0
    %1507 = vmatpush1.bf16.msra.mxu0 %v1484
    %1508 = vmatprep.subr.bf16.mxu0 0
    %1509 = vmatpush1.bf16.msra.mxu0 %v1485
    %1510 = vmatprep.subr.bf16.mxu0 0
    %1511 = vmatpush1.bf16.msra.mxu0 0
    %1512 = vmatprep.subr.bf16.mxu0 0
    %1513 = vmatpush1.bf16.msra.mxu0 0
    %1514 = vmatprep.subr.bf16.mxu0 0
    %1515 = vmatpush1.bf16.msra.mxu0 0
    %1516 = vmatprep.subr.bf16.mxu0 0
    %1517 = vmatpush1.bf16.msra.mxu0 0
    %1518 = vmatprep.subr.bf16.mxu0 0
    %1519 = vmatpush1.bf16.msra.mxu0 0
    %1520 = vmatprep.subr.bf16.mxu0 0
    %1521 = vmatpush1.bf16.msra.mxu0 0
    %1522 = vmatprep.subr.bf16.mxu0 0
    %1523 = vmatpush1.bf16.msra.mxu0 0
    %1524 = vmatprep.subr.bf16.mxu0 0
    %1525 = vmatpush1.bf16.msra.mxu0 0
    %1526 = vmatprep.mubr.bf16.mxu0 0
    %1527 = vmatmul.mubr.bf16.gmra.mrb[0].mxu0 %v1422
    %v1528 = vpop.f32.mrb[0].mxu0
    %v1529 = vadd.f32 %v1444, %v1528
    %v1530 = vpop.f32.mrb[0].mxu0
    %v1531 = vpop.f32.mrb[0].mxu0
    %v1532 = vadd.f32 %v1444, %v1531
    %v1533 = vpop.f32.mrb[0].mxu0
    %1534 = vdwg.mxu0
    %v1535 = vpack.c.bf16 %v1532, %v1529
    %v1537 = vcombine.high %v1535, %v1535
    %v1539 = vunpack.c.l.s4 1966171168
    %v1540 = vunpack.c.0.s8 %v1539
    %v1541 = vlaneseq
    %v1542 = vshrl.u32 %v1541, 7
    %v1543 = vsub.s32 %v1540, %v1542
    %v1544 = vrot.slane %v1535, %v1543
    %v1546 = vunpack.c.l.s4 1966171168
    %v1547 = vunpack.c.0.s8 %v1546
    %v1548 = vlaneseq
    %v1549 = vshrl.u32 %v1548, 7
    %v1550 = vsub.s32 %v1547, %v1549
    %v1551 = vrot.slane %v1537, %v1550
    %v1552 = vcombine.high %v1544, %v1544
    %v1553 = vcombine.high %v1551, %v1551
    %v1555 = vunpack.c.l.s4 1966171168
    %v1556 = vunpack.c.0.s8 %v1555
    %v1557 = vlaneseq
    %v1558 = vshrl.u32 %v1557, 7
    %v1559 = vsub.s32 %v1556, %v1558
    %v1560 = vrot.slane %v1544, %v1559
    %v1562 = vunpack.c.l.s4 1966171168
    %v1563 = vunpack.c.0.s8 %v1562
    %v1564 = vlaneseq
    %v1565 = vshrl.u32 %v1564, 7
    %v1566 = vsub.s32 %v1563, %v1565
    %v1567 = vrot.slane %v1551, %v1566
    %v1569 = vunpack.c.l.s4 1966171168
    %v1570 = vunpack.c.0.s8 %v1569
    %v1571 = vlaneseq
    %v1572 = vshrl.u32 %v1571, 7
    %v1573 = vsub.s32 %v1570, %v1572
    %v1574 = vrot.slane %v1552, %v1573
    %v1576 = vunpack.c.l.s4 1966171168
    %v1577 = vunpack.c.0.s8 %v1576
    %v1578 = vlaneseq
    %v1579 = vshrl.u32 %v1578, 7
    %v1580 = vsub.s32 %v1577, %v1579
    %v1581 = vrot.slane %v1553, %v1580
    %v1582 = vcombine.high %v1560, %v1560
    %v1583 = vcombine.high %v1567, %v1567
    %v1584 = vcombine.high %v1574, %v1574
    %v1585 = vcombine.high %v1581, %v1581
    %1594 = vst [vmem:[#allocation10] sm:$0x1] %v1560
    %1595 = vst [vmem:[#allocation10 + $0x1] sm:$0x1] %v1574
    %1596 = vst [vmem:[#allocation10 + $0x2] sm:$0x1] %v1582
    %1597 = vst [vmem:[#allocation10 + $0x3] sm:$0x1] %v1584
    %1598 = vst [vmem:[#allocation10 + $0x4] sm:$0x1] %v1567
    %1599 = vst [vmem:[#allocation10 + $0x5] sm:$0x1] %v1581
    %1600 = vst [vmem:[#allocation10 + $0x6] sm:$0x1] %v1583
    %1601 = vst [vmem:[#allocation10 + $0x7] sm:$0x1] %v1585
    %v1603 = vcombine.high %v1422, %v1422
    %v1605 = vunpack.c.l.s4 1966171168
    %v1606 = vunpack.c.0.s8 %v1605
    %v1607 = vlaneseq
    %v1608 = vshrl.u32 %v1607, 7
    %v1609 = vsub.s32 %v1606, %v1608
    %v1610 = vrot.slane %v1422, %v1609
    %v1612 = vunpack.c.l.s4 1966171168
    %v1613 = vunpack.c.0.s8 %v1612
    %v1614 = vlaneseq
    %v1615 = vshrl.u32 %v1614, 7
    %v1616 = vsub.s32 %v1613, %v1615
    %v1617 = vrot.slane %v1603, %v1616
    %v1618 = vcombine.high %v1610, %v1610
    %v1619 = vcombine.high %v1617, %v1617
    %v1621 = vunpack.c.l.s4 1966171168
    %v1622 = vunpack.c.0.s8 %v1621
    %v1623 = vlaneseq
    %v1624 = vshrl.u32 %v1623, 7
    %v1625 = vsub.s32 %v1622, %v1624
    %v1626 = vrot.slane %v1610, %v1625
    %v1628 = vunpack.c.l.s4 1966171168
    %v1629 = vunpack.c.0.s8 %v1628
    %v1630 = vlaneseq
    %v1631 = vshrl.u32 %v1630, 7
    %v1632 = vsub.s32 %v1629, %v1631
    %v1633 = vrot.slane %v1617, %v1632
    %v1635 = vunpack.c.l.s4 1966171168
    %v1636 = vunpack.c.0.s8 %v1635
    %v1637 = vlaneseq
    %v1638 = vshrl.u32 %v1637, 7
    %v1639 = vsub.s32 %v1636, %v1638
    %v1640 = vrot.slane %v1618, %v1639
    %v1642 = vunpack.c.l.s4 1966171168
    %v1643 = vunpack.c.0.s8 %v1642
    %v1644 = vlaneseq
    %v1645 = vshrl.u32 %v1644, 7
    %v1646 = vsub.s32 %v1643, %v1645
    %v1647 = vrot.slane %v1619, %v1646
    %v1648 = vcombine.high %v1626, %v1626
    %v1649 = vcombine.high %v1633, %v1633
    %v1650 = vcombine.high %v1640, %v1640
    %v1651 = vcombine.high %v1647, %v1647
    %1660 = vst [vmem:[#allocation11] sm:$0x1] %v1626
    %1661 = vst [vmem:[#allocation11 + $0x1] sm:$0x1] %v1640
    %1662 = vst [vmem:[#allocation11 + $0x2] sm:$0x1] %v1648
    %1663 = vst [vmem:[#allocation11 + $0x3] sm:$0x1] %v1650
    %1664 = vst [vmem:[#allocation11 + $0x4] sm:$0x1] %v1633
    %1665 = vst [vmem:[#allocation11 + $0x5] sm:$0x1] %v1647
    %1666 = vst [vmem:[#allocation11 + $0x6] sm:$0x1] %v1649
    %1667 = vst [vmem:[#allocation11 + $0x7] sm:$0x1] %v1651
    // Predicated region
    $region46: #{tpu_custom_call.1} parent=1 // pred_check
      _
    $region47: #{tpu_custom_call.1} parent=1 // pred_check_branch
      %1669 = sbr.rel (0) target = $region49
    $region48: #{tpu_custom_call.1} parent=1 // pred_region
      %s1671 = ssub.s32 128, 16
      %1672 = vsyncadd [#allocation4], %s1671
      %s1673 = sshll.u32 [#allocation10], 4
      %s1674 = int_to_ptr.vmem [resolvable:$true] %s1673
      %1679 = dma.vmem_to_hbm [thread:$0]  %s1674, 16, %s7, [#allocation4], 16, 16, 1
    $region49: #{tpu_custom_call.1} parent=1 // pred_fallthru
      _
    // Predicated region
    $region50: #{tpu_custom_call.1} parent=1 // pred_check
      _
    $region51: #{tpu_custom_call.1} parent=1 // pred_check_branch
      %1681 = sbr.rel (0) target = $region53
    $region52: #{tpu_custom_call.1} parent=1 // pred_region
      %s1683 = ssub.s32 128, 16
      %1684 = vsyncadd [#allocation12], %s1683
      %s1685 = sshll.u32 [#allocation11], 4
      %s1686 = int_to_ptr.vmem [resolvable:$true] %s1685
      %1691 = dma.vmem_to_hbm [thread:$0]  %s1686, 16, %s8, [#allocation12], 16, 16, 1
    $region53: #{tpu_custom_call.1} parent=1 // pred_fallthru
      _
    // Predicated region
    $region54: #{tpu_custom_call.1} parent=1 // pred_check
      _
    $region55: #{tpu_custom_call.1} parent=1 // pred_check_branch
      %1693 = sbr.rel (0) target = $region57
    $region56: #{tpu_custom_call.1} parent=1 // pred_region
      %1694 = dma.done [#allocation4], 128
    $region57: #{tpu_custom_call.1} parent=1 // pred_fallthru
      _
    // Predicated region
    $region58: #{tpu_custom_call.1} parent=1 // pred_check
      _
    $region59: #{tpu_custom_call.1} parent=1 // pred_check_branch
      %1696 = sbr.rel (0) target = $region61
    $region60: #{tpu_custom_call.1} parent=1 // pred_region
      %1697 = dma.done [#allocation12], 128
    $region61: #{tpu_custom_call.1} parent=1 // pred_fallthru
      _
    %1698 = vsyncpa [#allocation3], 1
    %1699 = vsyncpa [#allocation6], 1
    %1700 = vsyncpa [#allocation9], 1
    %1701 = vsyncpa [#allocation4], 1
    %1702 = vsyncpa [#allocation12], 1

</llo_original>
